<compile_context>
chip_gen: v7x
topology: tpu7x:2x2x1
jax: 0.10.0
libtpu: 0.0.40
codegen_flags: <defaults>
</compile_context>

<pallas_src>
import jax
import jax.numpy as jnp
from jax.experimental import pallas as pl
from jax.experimental.pallas import tpu as pltpu

BN_EPS = 1e-5
LRELU_SLOPE = 0.2
LANE = 128


def generator_kernel(
    x_ref,
    w1_ref, g1_ref, be1_ref,
    w2_ref, g2_ref, be2_ref,
    w3_ref, g3_ref, be3_ref,
    w4_ref, b4_ref,
    o_ref,
):
    """Whole-batch fused MLP: (Linear -> BN(train) -> LeakyReLU) x3 -> Linear -> Tanh.

    Weights arrive as bf16 (in_features, out_features); activations are cast to
    bf16 only for the MXU dots and accumulated in f32. All BN / LeakyReLU /
    tanh math runs in f32.

    BN uses whole-batch statistics, so the batch stays resident (no batch grid).
    # TODO(synk): a batch-tiled / dual-TensorCore (v7x) variant needs an explicit
    # cross-tile mean/var reduction (pl.when-finalized accumulator) before
    # normalizing; not needed at these sizes.
    """

    def matmul(h, w_ref):
        return jnp.dot(h.astype(jnp.bfloat16), w_ref[...],
                       preferred_element_type=jnp.float32)

    def bn_lrelu(h, g_ref, be_ref):
        # BatchNorm1d training mode: batch mean, biased batch variance.
        mu = jnp.mean(h, axis=0, keepdims=True)
        d = h - mu
        var = jnp.mean(d * d, axis=0, keepdims=True)
        h = g_ref[...] * (d * jax.lax.rsqrt(var + BN_EPS)) + be_ref[...]
        # LeakyReLU(0.2): for 0 < slope < 1, max(h, slope*h) == leaky_relu(h).
        return jnp.maximum(h, LRELU_SLOPE * h)

    h = bn_lrelu(matmul(x_ref[...], w1_ref), g1_ref, be1_ref)
    h = bn_lrelu(matmul(h, w2_ref), g2_ref, be2_ref)
    h = bn_lrelu(matmul(h, w3_ref), g3_ref, be3_ref)
    h = jnp.tanh(matmul(h, w4_ref) + b4_ref[...])
    o_ref[...] = h.astype(o_ref.dtype)


def _round_up(n, m=LANE):
    return ((n + m - 1) // m) * m


def _pad2d(a, rows, cols):
    return jnp.pad(a, ((0, rows - a.shape[0]), (0, cols - a.shape[1])))


def make_generator_params(key, z_size, output_channel, output_height, output_width):
    """Deterministic synthetic params matching nn.Linear / nn.BatchNorm1d shapes.

    Linear weights are stored as (in_features, out_features) so the kernel
    computes h @ W + b directly; biases / gamma / beta are (1, features).
    """
    dims = [z_size, 2 * z_size, 4 * z_size, 8 * z_size,
            output_channel * output_height * output_width]
    params = []
    for i in range(4):
        d_in, d_out = dims[i], dims[i + 1]
        key, kw, kb = jax.random.split(key, 3)
        bound = 1.0 / jnp.sqrt(d_in)
        params.append(jax.random.uniform(kw, (d_in, d_out), jnp.float32, -bound, bound))
        params.append(jax.random.uniform(kb, (1, d_out), jnp.float32, -bound, bound))
        if i < 3:
            params.append(jnp.ones((1, d_out), jnp.float32))   # BN gamma (fresh init)
            params.append(jnp.zeros((1, d_out), jnp.float32))  # BN beta  (fresh init)
    return params


def generator_forward(x, params, output_channel, output_height, output_width):
    (w1, _b1, g1, be1,
     w2, _b2, g2, be2,
     w3, _b3, g3, be3,
     w4, b4) = params
    # _b1.._b3 are intentionally unused: a bias added immediately before a
    # train-mode BatchNorm is exactly cancelled by the mean subtraction.

    B, z = x.shape
    out_dim = output_channel * output_height * output_width

    # Pad every feature dim to a multiple of 128 lanes. This is exact:
    #  * zero-padded x columns / zero-padded W input rows contribute 0 to dots,
    #  * zero-padded W output columns yield all-zero activation columns whose
    #    BN output is exactly 0 (0 * rsqrt(0 + eps) = 0, padded beta = 0) and
    #    LeakyReLU(0) = 0, which the next layer's zero-padded rows annihilate,
    #  * padded tanh output columns are sliced off before the reshape.
    zp  = _round_up(z)
    h1p = _round_up(w1.shape[1])
    h2p = _round_up(w2.shape[1])
    h3p = _round_up(w3.shape[1])
    odp = _round_up(out_dim)

    xp  = _pad2d(x,  B,   zp ).astype(jnp.bfloat16)
    w1p = _pad2d(w1, zp,  h1p).astype(jnp.bfloat16)
    w2p = _pad2d(w2, h1p, h2p).astype(jnp.bfloat16)
    w3p = _pad2d(w3, h2p, h3p).astype(jnp.bfloat16)
    w4p = _pad2d(w4, h3p, odp).astype(jnp.bfloat16)
    g1p, be1p = _pad2d(g1, 1, h1p), _pad2d(be1, 1, h1p)
    g2p, be2p = _pad2d(g2, 1, h2p), _pad2d(be2, 1, h2p)
    g3p, be3p = _pad2d(g3, 1, h3p), _pad2d(be3, 1, h3p)
    b4p = _pad2d(b4, 1, odp)

    args = (xp, w1p, g1p, be1p, w2p, g2p, be2p, w3p, g3p, be3p, w4p, b4p)

    flat = pl.pallas_call(
        generator_kernel,
        out_shape=jax.ShapeDtypeStruct((B, odp), jnp.float32),
        in_specs=[pl.BlockSpec(memory_space=pltpu.MemorySpace.VMEM)] * len(args),
        out_specs=pl.BlockSpec(memory_space=pltpu.MemorySpace.VMEM),
    )(*args)

    if odp != out_dim:
        flat = flat[:, :out_dim]
    # glue: PyTorch .view(-1, C, H, W)
    return flat.reshape(B, output_channel, output_height, output_width)


if __name__ == "__main__":
    # Shapes consistent with the module; batch chosen lane/MXU-aligned so the
    # call is not pure launch overhead.
    z_size = 32
    output_channel, output_height, output_width = 4, 8, 8
    batch = 256

    key = jax.random.PRNGKey(0)
    key, kx = jax.random.split(key)
    x = jax.random.normal(kx, (batch, z_size), jnp.float32)

    params = make_generator_params(key, z_size, output_channel, output_height, output_width)

    out = generator_forward(x, params, output_channel, output_height, output_width)
    out = jax.block_until_ready(out)

    assert out.shape == (batch, output_channel, output_height, output_width)
    assert bool(jnp.all(jnp.isfinite(out)))
    assert bool(jnp.all(jnp.abs(out) <= 1.0 + 1e-6))  # tanh range

    print("KERNEL_OK")
</pallas_src>

<mosaic_0001>
module attributes {stable_mosaic.version = 11 : i64} {
  func.func @generator_kernel(%arg0: memref<256x128xbf16, #tpu.memory_space<vmem>>, %arg1: memref<128x128xbf16, #tpu.memory_space<vmem>>, %arg2: memref<1x128xf32, #tpu.memory_space<vmem>>, %arg3: memref<1x128xf32, #tpu.memory_space<vmem>>, %arg4: memref<128x128xbf16, #tpu.memory_space<vmem>>, %arg5: memref<1x128xf32, #tpu.memory_space<vmem>>, %arg6: memref<1x128xf32, #tpu.memory_space<vmem>>, %arg7: memref<128x256xbf16, #tpu.memory_space<vmem>>, %arg8: memref<1x256xf32, #tpu.memory_space<vmem>>, %arg9: memref<1x256xf32, #tpu.memory_space<vmem>>, %arg10: memref<256x256xbf16, #tpu.memory_space<vmem>>, %arg11: memref<1x256xf32, #tpu.memory_space<vmem>>, %arg12: memref<256x256xf32, #tpu.memory_space<vmem>>) attributes {dimension_semantics = [], scalar_prefetch = 0 : i64, scratch_operands = 0 : i64, tpu.core_type = #tpu.core_type<tc>} {
    %c0 = arith.constant 0 : index
    %c0_0 = arith.constant 0 : index
    %0 = vector.load %arg0[%c0, %c0_0] : memref<256x128xbf16, #tpu.memory_space<vmem>>, vector<256x128xbf16>
    %c0_1 = arith.constant 0 : index
    %c0_2 = arith.constant 0 : index
    %1 = vector.load %arg1[%c0_1, %c0_2] : memref<128x128xbf16, #tpu.memory_space<vmem>>, vector<128x128xbf16>
    %cst = arith.constant dense<0.000000e+00> : vector<256x128xf32>
    %2 = tpu.matmul %0, %1, %cst {dimension_numbers = #tpu.dot_dimension_numbers<[1], [0], [0], [1], [0, 0, 1, 1], [], []>} : vector<256x128xbf16>, vector<128x128xbf16>, vector<256x128xf32> -> vector<256x128xf32>
    %cst_3 = arith.constant dense<0.000000e+00> : vector<128xf32>
    %3 = vector.multi_reduction <add>, %2, %cst_3 [0] : vector<256x128xf32> to vector<128xf32>
    %4 = vector.shape_cast %3 : vector<128xf32> to vector<1x128xf32>
    %cst_4 = arith.constant 2.560000e+02 : f32
    %5 = vector.broadcast %cst_4 : f32 to vector<1x128xf32>
    %6 = arith.divf %4, %5 : vector<1x128xf32>
    %7 = vector.broadcast %6 : vector<1x128xf32> to vector<256x128xf32>
    %8 = arith.subf %2, %7 : vector<256x128xf32>
    %9 = arith.mulf %8, %8 : vector<256x128xf32>
    %cst_5 = arith.constant dense<0.000000e+00> : vector<128xf32>
    %10 = vector.multi_reduction <add>, %9, %cst_5 [0] : vector<256x128xf32> to vector<128xf32>
    %11 = vector.shape_cast %10 : vector<128xf32> to vector<1x128xf32>
    %cst_6 = arith.constant 2.560000e+02 : f32
    %12 = vector.broadcast %cst_6 : f32 to vector<1x128xf32>
    %13 = arith.divf %11, %12 : vector<1x128xf32>
    %c0_7 = arith.constant 0 : index
    %c0_8 = arith.constant 0 : index
    %14 = vector.load %arg2[%c0_7, %c0_8] : memref<1x128xf32, #tpu.memory_space<vmem>>, vector<1x128xf32>
    %cst_9 = arith.constant 9.99999974E-6 : f32
    %15 = vector.broadcast %cst_9 : f32 to vector<1x128xf32>
    %16 = arith.addf %13, %15 : vector<1x128xf32>
    %17 = math.rsqrt %16 : vector<1x128xf32>
    %18 = vector.broadcast %17 : vector<1x128xf32> to vector<256x128xf32>
    %19 = arith.mulf %8, %18 : vector<256x128xf32>
    %20 = vector.broadcast %14 : vector<1x128xf32> to vector<256x128xf32>
    %21 = arith.mulf %20, %19 : vector<256x128xf32>
    %c0_10 = arith.constant 0 : index
    %c0_11 = arith.constant 0 : index
    %22 = vector.load %arg3[%c0_10, %c0_11] : memref<1x128xf32, #tpu.memory_space<vmem>>, vector<1x128xf32>
    %23 = vector.broadcast %22 : vector<1x128xf32> to vector<256x128xf32>
    %24 = arith.addf %21, %23 : vector<256x128xf32>
    %cst_12 = arith.constant 2.000000e-01 : f32
    %25 = vector.broadcast %cst_12 : f32 to vector<256x128xf32>
    %26 = arith.mulf %25, %24 : vector<256x128xf32>
    %27 = arith.maximumf %24, %26 : vector<256x128xf32>
    %28 = arith.truncf %27 : vector<256x128xf32> to vector<256x128xbf16>
    %c0_13 = arith.constant 0 : index
    %c0_14 = arith.constant 0 : index
    %29 = vector.load %arg4[%c0_13, %c0_14] : memref<128x128xbf16, #tpu.memory_space<vmem>>, vector<128x128xbf16>
    %cst_15 = arith.constant dense<0.000000e+00> : vector<256x128xf32>
    %30 = tpu.matmul %28, %29, %cst_15 {dimension_numbers = #tpu.dot_dimension_numbers<[1], [0], [0], [1], [0, 0, 1, 1], [], []>} : vector<256x128xbf16>, vector<128x128xbf16>, vector<256x128xf32> -> vector<256x128xf32>
    %cst_16 = arith.constant dense<0.000000e+00> : vector<128xf32>
    %31 = vector.multi_reduction <add>, %30, %cst_16 [0] : vector<256x128xf32> to vector<128xf32>
    %32 = vector.shape_cast %31 : vector<128xf32> to vector<1x128xf32>
    %cst_17 = arith.constant 2.560000e+02 : f32
    %33 = vector.broadcast %cst_17 : f32 to vector<1x128xf32>
    %34 = arith.divf %32, %33 : vector<1x128xf32>
    %35 = vector.broadcast %34 : vector<1x128xf32> to vector<256x128xf32>
    %36 = arith.subf %30, %35 : vector<256x128xf32>
    %37 = arith.mulf %36, %36 : vector<256x128xf32>
    %cst_18 = arith.constant dense<0.000000e+00> : vector<128xf32>
    %38 = vector.multi_reduction <add>, %37, %cst_18 [0] : vector<256x128xf32> to vector<128xf32>
    %39 = vector.shape_cast %38 : vector<128xf32> to vector<1x128xf32>
    %cst_19 = arith.constant 2.560000e+02 : f32
    %40 = vector.broadcast %cst_19 : f32 to vector<1x128xf32>
    %41 = arith.divf %39, %40 : vector<1x128xf32>
    %c0_20 = arith.constant 0 : index
    %c0_21 = arith.constant 0 : index
    %42 = vector.load %arg5[%c0_20, %c0_21] : memref<1x128xf32, #tpu.memory_space<vmem>>, vector<1x128xf32>
    %cst_22 = arith.constant 9.99999974E-6 : f32
    %43 = vector.broadcast %cst_22 : f32 to vector<1x128xf32>
    %44 = arith.addf %41, %43 : vector<1x128xf32>
    %45 = math.rsqrt %44 : vector<1x128xf32>
    %46 = vector.broadcast %45 : vector<1x128xf32> to vector<256x128xf32>
    %47 = arith.mulf %36, %46 : vector<256x128xf32>
    %48 = vector.broadcast %42 : vector<1x128xf32> to vector<256x128xf32>
    %49 = arith.mulf %48, %47 : vector<256x128xf32>
    %c0_23 = arith.constant 0 : index
    %c0_24 = arith.constant 0 : index
    %50 = vector.load %arg6[%c0_23, %c0_24] : memref<1x128xf32, #tpu.memory_space<vmem>>, vector<1x128xf32>
    %51 = vector.broadcast %50 : vector<1x128xf32> to vector<256x128xf32>
    %52 = arith.addf %49, %51 : vector<256x128xf32>
    %cst_25 = arith.constant 2.000000e-01 : f32
    %53 = vector.broadcast %cst_25 : f32 to vector<256x128xf32>
    %54 = arith.mulf %53, %52 : vector<256x128xf32>
    %55 = arith.maximumf %52, %54 : vector<256x128xf32>
    %56 = arith.truncf %55 : vector<256x128xf32> to vector<256x128xbf16>
    %c0_26 = arith.constant 0 : index
    %c0_27 = arith.constant 0 : index
    %57 = vector.load %arg7[%c0_26, %c0_27] : memref<128x256xbf16, #tpu.memory_space<vmem>>, vector<128x256xbf16>
    %cst_28 = arith.constant dense<0.000000e+00> : vector<256x256xf32>
    %58 = tpu.matmul %56, %57, %cst_28 {dimension_numbers = #tpu.dot_dimension_numbers<[1], [0], [0], [1], [0, 0, 1, 1], [], []>} : vector<256x128xbf16>, vector<128x256xbf16>, vector<256x256xf32> -> vector<256x256xf32>
    %cst_29 = arith.constant dense<0.000000e+00> : vector<256xf32>
    %59 = vector.multi_reduction <add>, %58, %cst_29 [0] : vector<256x256xf32> to vector<256xf32>
    %60 = vector.shape_cast %59 : vector<256xf32> to vector<1x256xf32>
    %cst_30 = arith.constant 2.560000e+02 : f32
    %61 = vector.broadcast %cst_30 : f32 to vector<1x256xf32>
    %62 = arith.divf %60, %61 : vector<1x256xf32>
    %63 = vector.broadcast %62 : vector<1x256xf32> to vector<256x256xf32>
    %64 = arith.subf %58, %63 : vector<256x256xf32>
    %65 = arith.mulf %64, %64 : vector<256x256xf32>
    %cst_31 = arith.constant dense<0.000000e+00> : vector<256xf32>
    %66 = vector.multi_reduction <add>, %65, %cst_31 [0] : vector<256x256xf32> to vector<256xf32>
    %67 = vector.shape_cast %66 : vector<256xf32> to vector<1x256xf32>
    %cst_32 = arith.constant 2.560000e+02 : f32
    %68 = vector.broadcast %cst_32 : f32 to vector<1x256xf32>
    %69 = arith.divf %67, %68 : vector<1x256xf32>
    %c0_33 = arith.constant 0 : index
    %c0_34 = arith.constant 0 : index
    %70 = vector.load %arg8[%c0_33, %c0_34] : memref<1x256xf32, #tpu.memory_space<vmem>>, vector<1x256xf32>
    %cst_35 = arith.constant 9.99999974E-6 : f32
    %71 = vector.broadcast %cst_35 : f32 to vector<1x256xf32>
    %72 = arith.addf %69, %71 : vector<1x256xf32>
    %73 = math.rsqrt %72 : vector<1x256xf32>
    %74 = vector.broadcast %73 : vector<1x256xf32> to vector<256x256xf32>
    %75 = arith.mulf %64, %74 : vector<256x256xf32>
    %76 = vector.broadcast %70 : vector<1x256xf32> to vector<256x256xf32>
    %77 = arith.mulf %76, %75 : vector<256x256xf32>
    %c0_36 = arith.constant 0 : index
    %c0_37 = arith.constant 0 : index
    %78 = vector.load %arg9[%c0_36, %c0_37] : memref<1x256xf32, #tpu.memory_space<vmem>>, vector<1x256xf32>
    %79 = vector.broadcast %78 : vector<1x256xf32> to vector<256x256xf32>
    %80 = arith.addf %77, %79 : vector<256x256xf32>
    %cst_38 = arith.constant 2.000000e-01 : f32
    %81 = vector.broadcast %cst_38 : f32 to vector<256x256xf32>
    %82 = arith.mulf %81, %80 : vector<256x256xf32>
    %83 = arith.maximumf %80, %82 : vector<256x256xf32>
    %84 = arith.truncf %83 : vector<256x256xf32> to vector<256x256xbf16>
    %c0_39 = arith.constant 0 : index
    %c0_40 = arith.constant 0 : index
    %85 = vector.load %arg10[%c0_39, %c0_40] : memref<256x256xbf16, #tpu.memory_space<vmem>>, vector<256x256xbf16>
    %cst_41 = arith.constant dense<0.000000e+00> : vector<256x256xf32>
    %86 = tpu.matmul %84, %85, %cst_41 {dimension_numbers = #tpu.dot_dimension_numbers<[1], [0], [0], [1], [0, 0, 1, 1], [], []>} : vector<256x256xbf16>, vector<256x256xbf16>, vector<256x256xf32> -> vector<256x256xf32>
    %c0_42 = arith.constant 0 : index
    %c0_43 = arith.constant 0 : index
    %87 = vector.load %arg11[%c0_42, %c0_43] : memref<1x256xf32, #tpu.memory_space<vmem>>, vector<1x256xf32>
    %88 = vector.broadcast %87 : vector<1x256xf32> to vector<256x256xf32>
    %89 = arith.addf %86, %88 : vector<256x256xf32>
    %90 = math.tanh %89 : vector<256x256xf32>
    %c0_44 = arith.constant 0 : index
    %c0_45 = arith.constant 0 : index
    %91 = vector.load %arg12[%c0_44, %c0_45] : memref<256x256xf32, #tpu.memory_space<vmem>>, vector<256x256xf32>
    tpu.vector_store %arg12[%c0_44, %c0_45], %90 {strides = array<i32>} : memref<256x256xf32, #tpu.memory_space<vmem>>, vector<256x256xf32>,
    return
  }
}

</mosaic_0001>

<llo_original>
// kernel: tpu_custom_call.1
$region0: #{tpu_custom_call.1}
  #allocation0 [shape = 'u32[]', space=smem, size = 0x4, offset = 0x4, fixed_abs, tag = 'smem constant byte address 0x4 - core index']
  #allocation1 [shape = 'u32[144,128]{1,0:T(1,128)}', space=vmem, size = 0x12000, scoped, tag = 'internal scratch']
  %s0 = inlined_call_operand.hbm [shape: bf16[256,128], index: 0, kind: input, shape index: {}]
  %s1 = inlined_call_operand.hbm [shape: bf16[128,128], index: 1, kind: input, shape index: {}]
  %s2 = inlined_call_operand.vmem [shape: f32[1,128], index: 2, kind: input, shape index: {}]
  %s3 = inlined_call_operand.vmem [shape: f32[1,128], index: 3, kind: input, shape index: {}]
  %s4 = inlined_call_operand.hbm [shape: bf16[128,128], index: 4, kind: input, shape index: {}]
  %s5 = inlined_call_operand.vmem [shape: f32[1,128], index: 5, kind: input, shape index: {}]
  %s6 = inlined_call_operand.vmem [shape: f32[1,128], index: 6, kind: input, shape index: {}]
  %s7 = inlined_call_operand.hbm [shape: bf16[128,256], index: 7, kind: input, shape index: {}]
  %s8 = inlined_call_operand.vmem [shape: f32[1,256], index: 8, kind: input, shape index: {}]
  %s9 = inlined_call_operand.vmem [shape: f32[1,256], index: 9, kind: input, shape index: {}]
  %s10 = inlined_call_operand.hbm [shape: bf16[256,256], index: 10, kind: input, shape index: {}]
  %s11 = inlined_call_operand.vmem [shape: f32[1,256], index: 11, kind: input, shape index: {}]
  %s12 = inlined_call_operand.hbm [shape: f32[256,256], index: 12, kind: output, shape index: {}]
  %s13 = sld [smem:[#allocation0]]
  $region78: #{tpu_custom_call.1} parent=0
    _
  %s15 = ssub.s32 1, %s13
  %s16 = scalar_select 0, %s15, %s13
  $region1: #{tpu_custom_call.1} parent=0
    #allocation2 [shape = 'u8[65536]{0}', space=vmem, size = 0x10000, scoped, tag = 'input window, operand 0, single buffered']
    #allocation3 [shape = 's32[1]{0}', space=sflag, size = 0x4, scoped, tag = 'scoped memory for tpu_custom_call.1']
    #allocation4 [shape = 's32[1]{0}', space=sflag, size = 0x4, scoped, tag = 'scoped memory for tpu_custom_call.1']
    #allocation5 [shape = 'u8[32768]{0}', space=vmem, size = 0x8000, scoped, tag = 'input window, operand 1, single buffered']
    #allocation6 [shape = 's32[1]{0}', space=sflag, size = 0x4, scoped, tag = 'scoped memory for tpu_custom_call.1']
    #allocation7 [shape = 'u8[32768]{0}', space=vmem, size = 0x8000, scoped, tag = 'input window, operand 4, single buffered']
    #allocation8 [shape = 'u8[65536]{0}', space=vmem, size = 0x10000, scoped, tag = 'input window, operand 7, single buffered']
    #allocation9 [shape = 's32[1]{0}', space=sflag, size = 0x4, scoped, tag = 'scoped memory for tpu_custom_call.1']
    #allocation10 [shape = 'u8[131072]{0}', space=vmem, size = 0x20000, scoped, tag = 'input window, operand 10, single buffered']
    #allocation11 [shape = 'u8[262144]{0}', space=vmem, size = 0x40000, scoped, tag = 'output window, operand 0, single buffered']
    %17 = vsyncpa [#allocation3], 0
    %18 = vsyncpa [#allocation6], 0
    %19 = vsyncpa [#allocation9], 0
    %20 = vsyncpa [#allocation4], 0
    // Predicated region
    $region2: #{tpu_custom_call.1} parent=1 // pred_check
      _
    $region3: #{tpu_custom_call.1} parent=1 // pred_check_branch
      %22 = sbr.rel (0) target = $region5
    $region4: #{tpu_custom_call.1} parent=1 // pred_region
      %s24 = ssub.s32 2048, 2048
      %25 = vsyncadd [#allocation3], %s24
      %s26 = sshll.u32 [#allocation2], 4
      %s27 = int_to_ptr.vmem [resolvable:$true] %s26
      %32 = dma.hbm_to_vmem [thread:$0]  %s0, 2048, %s27, [#allocation3], 64, 64, 4
    $region5: #{tpu_custom_call.1} parent=1 // pred_fallthru
      _
    // Predicated region
    $region6: #{tpu_custom_call.1} parent=1 // pred_check
      _
    $region7: #{tpu_custom_call.1} parent=1 // pred_check_branch
      %34 = sbr.rel (0) target = $region9
    $region8: #{tpu_custom_call.1} parent=1 // pred_region
      %s36 = ssub.s32 1024, 1024
      %37 = vsyncadd [#allocation6], %s36
      %s38 = sshll.u32 [#allocation5], 4
      %s39 = int_to_ptr.vmem [resolvable:$true] %s38
      %44 = dma.hbm_to_vmem [thread:$0]  %s1, 1024, %s39, [#allocation6], 64, 64, 4
    $region9: #{tpu_custom_call.1} parent=1 // pred_fallthru
      _
    // Predicated region
    $region10: #{tpu_custom_call.1} parent=1 // pred_check
      _
    $region11: #{tpu_custom_call.1} parent=1 // pred_check_branch
      %46 = sbr.rel (0) target = $region13
    $region12: #{tpu_custom_call.1} parent=1 // pred_region
      _
    $region13: #{tpu_custom_call.1} parent=1 // pred_fallthru
      _
    // Predicated region
    $region14: #{tpu_custom_call.1} parent=1 // pred_check
      _
    $region15: #{tpu_custom_call.1} parent=1 // pred_check_branch
      %48 = sbr.rel (0) target = $region17
    $region16: #{tpu_custom_call.1} parent=1 // pred_region
      _
    $region17: #{tpu_custom_call.1} parent=1 // pred_fallthru
      _
    // Predicated region
    $region18: #{tpu_custom_call.1} parent=1 // pred_check
      _
    $region19: #{tpu_custom_call.1} parent=1 // pred_check_branch
      %50 = sbr.rel (0) target = $region21
    $region20: #{tpu_custom_call.1} parent=1 // pred_region
      %s52 = ssub.s32 1024, 1024
      %53 = vsyncadd [#allocation6], %s52
      %s54 = sshll.u32 [#allocation7], 4
      %s55 = int_to_ptr.vmem [resolvable:$true] %s54
      %60 = dma.hbm_to_vmem [thread:$0]  %s4, 1024, %s55, [#allocation6], 64, 64, 4
    $region21: #{tpu_custom_call.1} parent=1 // pred_fallthru
      _
    // Predicated region
    $region22: #{tpu_custom_call.1} parent=1 // pred_check
      _
    $region23: #{tpu_custom_call.1} parent=1 // pred_check_branch
      %62 = sbr.rel (0) target = $region25
    $region24: #{tpu_custom_call.1} parent=1 // pred_region
      _
    $region25: #{tpu_custom_call.1} parent=1 // pred_fallthru
      _
    // Predicated region
    $region26: #{tpu_custom_call.1} parent=1 // pred_check
      _
    $region27: #{tpu_custom_call.1} parent=1 // pred_check_branch
      %64 = sbr.rel (0) target = $region29
    $region28: #{tpu_custom_call.1} parent=1 // pred_region
      _
    $region29: #{tpu_custom_call.1} parent=1 // pred_fallthru
      _
    // Predicated region
    $region30: #{tpu_custom_call.1} parent=1 // pred_check
      _
    $region31: #{tpu_custom_call.1} parent=1 // pred_check_branch
      %66 = sbr.rel (0) target = $region33
    $region32: #{tpu_custom_call.1} parent=1 // pred_region
      %s68 = ssub.s32 2048, 2048
      %69 = vsyncadd [#allocation9], %s68
      %s70 = sshll.u32 [#allocation8], 4
      %s71 = int_to_ptr.vmem [resolvable:$true] %s70
      %76 = dma.hbm_to_vmem [thread:$0]  %s7, 2048, %s71, [#allocation9], 128, 128, 8
    $region33: #{tpu_custom_call.1} parent=1 // pred_fallthru
      _
    // Predicated region
    $region34: #{tpu_custom_call.1} parent=1 // pred_check
      _
    $region35: #{tpu_custom_call.1} parent=1 // pred_check_branch
      %78 = sbr.rel (0) target = $region37
    $region36: #{tpu_custom_call.1} parent=1 // pred_region
      _
    $region37: #{tpu_custom_call.1} parent=1 // pred_fallthru
      _
    // Predicated region
    $region38: #{tpu_custom_call.1} parent=1 // pred_check
      _
    $region39: #{tpu_custom_call.1} parent=1 // pred_check_branch
      %80 = sbr.rel (0) target = $region41
    $region40: #{tpu_custom_call.1} parent=1 // pred_region
      _
    $region41: #{tpu_custom_call.1} parent=1 // pred_fallthru
      _
    // Predicated region
    $region42: #{tpu_custom_call.1} parent=1 // pred_check
      _
    $region43: #{tpu_custom_call.1} parent=1 // pred_check_branch
      %82 = sbr.rel (0) target = $region45
    $region44: #{tpu_custom_call.1} parent=1 // pred_region
      %s84 = ssub.s32 4096, 4096
      %85 = vsyncadd [#allocation9], %s84
      %s86 = sshll.u32 [#allocation10], 4
      %s87 = int_to_ptr.vmem [resolvable:$true] %s86
      %92 = dma.hbm_to_vmem [thread:$0]  %s10, 4096, %s87, [#allocation9], 128, 128, 8
    $region45: #{tpu_custom_call.1} parent=1 // pred_fallthru
      _
    // Predicated region
    $region46: #{tpu_custom_call.1} parent=1 // pred_check
      _
    $region47: #{tpu_custom_call.1} parent=1 // pred_check_branch
      %94 = sbr.rel (0) target = $region49
    $region48: #{tpu_custom_call.1} parent=1 // pred_region
      _
    $region49: #{tpu_custom_call.1} parent=1 // pred_fallthru
      _
    // Predicated region
    $region50: #{tpu_custom_call.1} parent=1 // pred_check
      _
    $region51: #{tpu_custom_call.1} parent=1 // pred_check_branch
      %96 = sbr.rel (0) target = $region53
    $region52: #{tpu_custom_call.1} parent=1 // pred_region
      %97 = dma.done [#allocation3], 2048
    $region53: #{tpu_custom_call.1} parent=1 // pred_fallthru
      _
    // Predicated region
    $region54: #{tpu_custom_call.1} parent=1 // pred_check
      _
    $region55: #{tpu_custom_call.1} parent=1 // pred_check_branch
      %99 = sbr.rel (0) target = $region57
    $region56: #{tpu_custom_call.1} parent=1 // pred_region
      %100 = dma.done [#allocation6], 1024
    $region57: #{tpu_custom_call.1} parent=1 // pred_fallthru
      _
    // Predicated region
    $region58: #{tpu_custom_call.1} parent=1 // pred_check
      _
    $region59: #{tpu_custom_call.1} parent=1 // pred_check_branch
      %102 = sbr.rel (0) target = $region61
    $region60: #{tpu_custom_call.1} parent=1 // pred_region
      %103 = dma.done [#allocation6], 1024
    $region61: #{tpu_custom_call.1} parent=1 // pred_fallthru
      _
    // Predicated region
    $region62: #{tpu_custom_call.1} parent=1 // pred_check
      _
    $region63: #{tpu_custom_call.1} parent=1 // pred_check_branch
      %105 = sbr.rel (0) target = $region65
    $region64: #{tpu_custom_call.1} parent=1 // pred_region
      %106 = dma.done [#allocation9], 2048
    $region65: #{tpu_custom_call.1} parent=1 // pred_fallthru
      _
    // Predicated region
    $region66: #{tpu_custom_call.1} parent=1 // pred_check
      _
    $region67: #{tpu_custom_call.1} parent=1 // pred_check_branch
      %108 = sbr.rel (0) target = $region69
    $region68: #{tpu_custom_call.1} parent=1 // pred_region
      %109 = dma.done [#allocation9], 4096
    $region69: #{tpu_custom_call.1} parent=1 // pred_fallthru
      _
    %v111 = vld [vmem:[#allocation2] sm:$0xf]
    %v112 = vld [vmem:[#allocation2 + $0x4] sm:$0xf]
    %v113 = vld [vmem:[#allocation2 + $0x8] sm:$0xf]
    %v114 = vld [vmem:[#allocation2 + $0xc] sm:$0xf]
    %v115 = vld [vmem:[#allocation2 + $0x10] sm:$0xf]
    %v116 = vld [vmem:[#allocation2 + $0x14] sm:$0xf]
    %v117 = vld [vmem:[#allocation2 + $0x18] sm:$0xf]
    %v118 = vld [vmem:[#allocation2 + $0x1c] sm:$0xf]
    %v119 = vld [vmem:[#allocation2 + $0x20] sm:$0xf]
    %v120 = vld [vmem:[#allocation2 + $0x24] sm:$0xf]
    %v121 = vld [vmem:[#allocation2 + $0x28] sm:$0xf]
    %v122 = vld [vmem:[#allocation2 + $0x2c] sm:$0xf]
    %v123 = vld [vmem:[#allocation2 + $0x30] sm:$0xf]
    %v124 = vld [vmem:[#allocation2 + $0x34] sm:$0xf]
    %v125 = vld [vmem:[#allocation2 + $0x38] sm:$0xf]
    %v126 = vld [vmem:[#allocation2 + $0x3c] sm:$0xf]
    %v127 = vld [vmem:[#allocation2 + $0x40] sm:$0xf]
    %v128 = vld [vmem:[#allocation2 + $0x44] sm:$0xf]
    %v129 = vld [vmem:[#allocation2 + $0x48] sm:$0xf]
    %v130 = vld [vmem:[#allocation2 + $0x4c] sm:$0xf]
    %v131 = vld [vmem:[#allocation2 + $0x50] sm:$0xf]
    %v132 = vld [vmem:[#allocation2 + $0x54] sm:$0xf]
    %v133 = vld [vmem:[#allocation2 + $0x58] sm:$0xf]
    %v134 = vld [vmem:[#allocation2 + $0x5c] sm:$0xf]
    %v135 = vld [vmem:[#allocation2 + $0x60] sm:$0xf]
    %v136 = vld [vmem:[#allocation2 + $0x64] sm:$0xf]
    %v137 = vld [vmem:[#allocation2 + $0x68] sm:$0xf]
    %v138 = vld [vmem:[#allocation2 + $0x6c] sm:$0xf]
    %v139 = vld [vmem:[#allocation2 + $0x70] sm:$0xf]
    %v140 = vld [vmem:[#allocation2 + $0x74] sm:$0xf]
    %v141 = vld [vmem:[#allocation2 + $0x78] sm:$0xf]
    %v142 = vld [vmem:[#allocation2 + $0x7c] sm:$0xf]
    %v143 = vld [vmem:[#allocation5] sm:$0xf]
    %v144 = vld [vmem:[#allocation5 + $0x4] sm:$0xf]
    %v145 = vld [vmem:[#allocation5 + $0x8] sm:$0xf]
    %v146 = vld [vmem:[#allocation5 + $0xc] sm:$0xf]
    %v147 = vld [vmem:[#allocation5 + $0x10] sm:$0xf]
    %v148 = vld [vmem:[#allocation5 + $0x14] sm:$0xf]
    %v149 = vld [vmem:[#allocation5 + $0x18] sm:$0xf]
    %v150 = vld [vmem:[#allocation5 + $0x1c] sm:$0xf]
    %v151 = vld [vmem:[#allocation5 + $0x20] sm:$0xf]
    %v152 = vld [vmem:[#allocation5 + $0x24] sm:$0xf]
    %v153 = vld [vmem:[#allocation5 + $0x28] sm:$0xf]
    %v154 = vld [vmem:[#allocation5 + $0x2c] sm:$0xf]
    %v155 = vld [vmem:[#allocation5 + $0x30] sm:$0xf]
    %v156 = vld [vmem:[#allocation5 + $0x34] sm:$0xf]
    %v157 = vld [vmem:[#allocation5 + $0x38] sm:$0xf]
    %v158 = vld [vmem:[#allocation5 + $0x3c] sm:$0xf]
    %v191 = vunpack.c.l.b16 %v111
    %v192 = vunpack.c.l.b16 %v112
    %v193 = vunpack.c.l.b16 %v113
    %v194 = vunpack.c.l.b16 %v114
    %v195 = vunpack.c.l.b16 %v115
    %v196 = vunpack.c.l.b16 %v116
    %v197 = vunpack.c.l.b16 %v117
    %v198 = vunpack.c.l.b16 %v118
    %v199 = vunpack.c.l.b16 %v119
    %v200 = vunpack.c.l.b16 %v120
    %v201 = vunpack.c.l.b16 %v121
    %v202 = vunpack.c.l.b16 %v122
    %v203 = vunpack.c.l.b16 %v123
    %v204 = vunpack.c.l.b16 %v124
    %v205 = vunpack.c.l.b16 %v125
    %v206 = vunpack.c.l.b16 %v126
    %v207 = vunpack.c.l.b16 %v127
    %v208 = vunpack.c.l.b16 %v128
    %v209 = vunpack.c.l.b16 %v129
    %v210 = vunpack.c.l.b16 %v130
    %v211 = vunpack.c.l.b16 %v131
    %v212 = vunpack.c.l.b16 %v132
    %v213 = vunpack.c.l.b16 %v133
    %v214 = vunpack.c.l.b16 %v134
    %v215 = vunpack.c.l.b16 %v135
    %v216 = vunpack.c.l.b16 %v136
    %v217 = vunpack.c.l.b16 %v137
    %v218 = vunpack.c.l.b16 %v138
    %v219 = vunpack.c.l.b16 %v139
    %v220 = vunpack.c.l.b16 %v140
    %v221 = vunpack.c.l.b16 %v141
    %v222 = vunpack.c.l.b16 %v142
    %v223 = vpack.c.b16 %v192, %v191
    %v224 = vpack.c.b16 %v194, %v193
    %v225 = vpack.c.b16 %v196, %v195
    %v226 = vpack.c.b16 %v198, %v197
    %v227 = vpack.c.b16 %v200, %v199
    %v228 = vpack.c.b16 %v202, %v201
    %v229 = vpack.c.b16 %v204, %v203
    %v230 = vpack.c.b16 %v206, %v205
    %v231 = vpack.c.b16 %v208, %v207
    %v232 = vpack.c.b16 %v210, %v209
    %v233 = vpack.c.b16 %v212, %v211
    %v234 = vpack.c.b16 %v214, %v213
    %v235 = vpack.c.b16 %v216, %v215
    %v236 = vpack.c.b16 %v218, %v217
    %v237 = vpack.c.b16 %v220, %v219
    %v238 = vpack.c.b16 %v222, %v221
    %v271 = vunpack.c.l.b16 %v143
    %v272 = vunpack.c.l.b16 %v144
    %v273 = vunpack.c.l.b16 %v145
    %v274 = vunpack.c.l.b16 %v146
    %v275 = vunpack.c.l.b16 %v147
    %v276 = vunpack.c.l.b16 %v148
    %v277 = vunpack.c.l.b16 %v149
    %v278 = vunpack.c.l.b16 %v150
    %v279 = vunpack.c.l.b16 %v151
    %v280 = vunpack.c.l.b16 %v152
    %v281 = vunpack.c.l.b16 %v153
    %v282 = vunpack.c.l.b16 %v154
    %v283 = vunpack.c.l.b16 %v155
    %v284 = vunpack.c.l.b16 %v156
    %v285 = vunpack.c.l.b16 %v157
    %v286 = vunpack.c.l.b16 %v158
    %v287 = vpack.c.b16 %v272, %v271
    %v288 = vpack.c.b16 %v274, %v273
    %v289 = vpack.c.b16 %v276, %v275
    %v290 = vpack.c.b16 %v278, %v277
    %v291 = vpack.c.b16 %v280, %v279
    %v292 = vpack.c.b16 %v282, %v281
    %v293 = vpack.c.b16 %v284, %v283
    %v294 = vpack.c.b16 %v286, %v285
    %303 = vmatprep.subr.bf16.mxu0 0
    %304 = vmatpush1.bf16.msra.mxu0 %v287
    %305 = vmatprep.subr.bf16.mxu0 0
    %306 = vmatpush1.bf16.msra.mxu0 %v288
    %307 = vmatprep.subr.bf16.mxu0 0
    %308 = vmatpush1.bf16.msra.mxu0 %v289
    %309 = vmatprep.subr.bf16.mxu0 0
    %310 = vmatpush1.bf16.msra.mxu0 %v290
    %311 = vmatprep.subr.bf16.mxu0 0
    %312 = vmatpush1.bf16.msra.mxu0 %v291
    %313 = vmatprep.subr.bf16.mxu0 0
    %314 = vmatpush1.bf16.msra.mxu0 %v292
    %315 = vmatprep.subr.bf16.mxu0 0
    %316 = vmatpush1.bf16.msra.mxu0 %v293
    %317 = vmatprep.subr.bf16.mxu0 0
    %318 = vmatpush1.bf16.msra.mxu0 %v294
    %319 = vmatprep.subr.bf16.mxu0 0
    %320 = vmatpush1.bf16.msra.mxu0 0
    %321 = vmatprep.subr.bf16.mxu0 0
    %322 = vmatpush1.bf16.msra.mxu0 0
    %323 = vmatprep.subr.bf16.mxu0 0
    %324 = vmatpush1.bf16.msra.mxu0 0
    %325 = vmatprep.subr.bf16.mxu0 0
    %326 = vmatpush1.bf16.msra.mxu0 0
    %327 = vmatprep.subr.bf16.mxu0 0
    %328 = vmatpush1.bf16.msra.mxu0 0
    %329 = vmatprep.subr.bf16.mxu0 0
    %330 = vmatpush1.bf16.msra.mxu0 0
    %331 = vmatprep.subr.bf16.mxu0 0
    %332 = vmatpush1.bf16.msra.mxu0 0
    %333 = vmatprep.subr.bf16.mxu0 0
    %334 = vmatpush1.bf16.msra.mxu0 0
    %335 = vmatprep.mubr.bf16.mxu0 0
    %336 = vmatmul.mubr.bf16.gmra.mrb[0].mxu0 %v223
    %v337 = vpop.f32.mrb[0].mxu0
    %v338 = vadd.f32 0.0, %v337
    %v339 = vpop.f32.mrb[0].mxu0
    %v340 = vpop.f32.mrb[0].mxu0
    %v341 = vadd.f32 0.0, %v340
    %v342 = vpop.f32.mrb[0].mxu0
    %343 = vmatprep.mubr.bf16.mxu0 0
    %344 = vmatmul.mubr.bf16.gmra.mrb[0].mxu0 %v224
    %v345 = vpop.f32.mrb[0].mxu0
    %v346 = vadd.f32 0.0, %v345
    %v347 = vpop.f32.mrb[0].mxu0
    %v348 = vpop.f32.mrb[0].mxu0
    %v349 = vadd.f32 0.0, %v348
    %v350 = vpop.f32.mrb[0].mxu0
    %351 = vmatprep.mubr.bf16.mxu0 0
    %352 = vmatmul.mubr.bf16.gmra.mrb[0].mxu0 %v225
    %v353 = vpop.f32.mrb[0].mxu0
    %v354 = vadd.f32 0.0, %v353
    %v355 = vpop.f32.mrb[0].mxu0
    %v356 = vpop.f32.mrb[0].mxu0
    %v357 = vadd.f32 0.0, %v356
    %v358 = vpop.f32.mrb[0].mxu0
    %359 = vmatprep.mubr.bf16.mxu0 0
    %360 = vmatmul.mubr.bf16.gmra.mrb[0].mxu0 %v226
    %v361 = vpop.f32.mrb[0].mxu0
    %v362 = vadd.f32 0.0, %v361
    %v363 = vpop.f32.mrb[0].mxu0
    %v364 = vpop.f32.mrb[0].mxu0
    %v365 = vadd.f32 0.0, %v364
    %v366 = vpop.f32.mrb[0].mxu0
    %367 = vmatprep.mubr.bf16.mxu0 0
    %368 = vmatmul.mubr.bf16.gmra.mrb[0].mxu0 %v227
    %v369 = vpop.f32.mrb[0].mxu0
    %v370 = vadd.f32 0.0, %v369
    %v371 = vpop.f32.mrb[0].mxu0
    %v372 = vpop.f32.mrb[0].mxu0
    %v373 = vadd.f32 0.0, %v372
    %v374 = vpop.f32.mrb[0].mxu0
    %375 = vmatprep.mubr.bf16.mxu0 0
    %376 = vmatmul.mubr.bf16.gmra.mrb[0].mxu0 %v228
    %v377 = vpop.f32.mrb[0].mxu0
    %v378 = vadd.f32 0.0, %v377
    %v379 = vpop.f32.mrb[0].mxu0
    %v380 = vpop.f32.mrb[0].mxu0
    %v381 = vadd.f32 0.0, %v380
    %v382 = vpop.f32.mrb[0].mxu0
    %383 = vmatprep.mubr.bf16.mxu0 0
    %384 = vmatmul.mubr.bf16.gmra.mrb[0].mxu0 %v229
    %v385 = vpop.f32.mrb[0].mxu0
    %v386 = vadd.f32 0.0, %v385
    %v387 = vpop.f32.mrb[0].mxu0
    %v388 = vpop.f32.mrb[0].mxu0
    %v389 = vadd.f32 0.0, %v388
    %v390 = vpop.f32.mrb[0].mxu0
    %391 = vmatprep.mubr.bf16.mxu0 0
    %392 = vmatmul.mubr.bf16.gmra.mrb[0].mxu0 %v230
    %v393 = vpop.f32.mrb[0].mxu0
    %v394 = vadd.f32 0.0, %v393
    %v395 = vpop.f32.mrb[0].mxu0
    %v396 = vpop.f32.mrb[0].mxu0
    %v397 = vadd.f32 0.0, %v396
    %v398 = vpop.f32.mrb[0].mxu0
    %399 = vmatprep.mubr.bf16.mxu0 0
    %400 = vmatmul.mubr.bf16.gmra.mrb[0].mxu0 %v231
    %v401 = vpop.f32.mrb[0].mxu0
    %v402 = vadd.f32 0.0, %v401
    %v403 = vpop.f32.mrb[0].mxu0
    %v404 = vpop.f32.mrb[0].mxu0
    %v405 = vadd.f32 0.0, %v404
    %v406 = vpop.f32.mrb[0].mxu0
    %407 = vmatprep.mubr.bf16.mxu0 0
    %408 = vmatmul.mubr.bf16.gmra.mrb[0].mxu0 %v232
    %v409 = vpop.f32.mrb[0].mxu0
    %v410 = vadd.f32 0.0, %v409
    %v411 = vpop.f32.mrb[0].mxu0
    %v412 = vpop.f32.mrb[0].mxu0
    %v413 = vadd.f32 0.0, %v412
    %v414 = vpop.f32.mrb[0].mxu0
    %415 = vmatprep.mubr.bf16.mxu0 0
    %416 = vmatmul.mubr.bf16.gmra.mrb[0].mxu0 %v233
    %v417 = vpop.f32.mrb[0].mxu0
    %v418 = vadd.f32 0.0, %v417
    %v419 = vpop.f32.mrb[0].mxu0
    %v420 = vpop.f32.mrb[0].mxu0
    %v421 = vadd.f32 0.0, %v420
    %v422 = vpop.f32.mrb[0].mxu0
    %423 = vmatprep.mubr.bf16.mxu0 0
    %424 = vmatmul.mubr.bf16.gmra.mrb[0].mxu0 %v234
    %v425 = vpop.f32.mrb[0].mxu0
    %v426 = vadd.f32 0.0, %v425
    %v427 = vpop.f32.mrb[0].mxu0
    %v428 = vpop.f32.mrb[0].mxu0
    %v429 = vadd.f32 0.0, %v428
    %v430 = vpop.f32.mrb[0].mxu0
    %431 = vmatprep.mubr.bf16.mxu0 0
    %432 = vmatmul.mubr.bf16.gmra.mrb[0].mxu0 %v235
    %v433 = vpop.f32.mrb[0].mxu0
    %v434 = vadd.f32 0.0, %v433
    %v435 = vpop.f32.mrb[0].mxu0
    %v436 = vpop.f32.mrb[0].mxu0
    %v437 = vadd.f32 0.0, %v436
    %v438 = vpop.f32.mrb[0].mxu0
    %439 = vmatprep.mubr.bf16.mxu0 0
    %440 = vmatmul.mubr.bf16.gmra.mrb[0].mxu0 %v236
    %v441 = vpop.f32.mrb[0].mxu0
    %v442 = vadd.f32 0.0, %v441
    %v443 = vpop.f32.mrb[0].mxu0
    %v444 = vpop.f32.mrb[0].mxu0
    %v445 = vadd.f32 0.0, %v444
    %v446 = vpop.f32.mrb[0].mxu0
    %447 = vmatprep.mubr.bf16.mxu0 0
    %448 = vmatmul.mubr.bf16.gmra.mrb[0].mxu0 %v237
    %v449 = vpop.f32.mrb[0].mxu0
    %v450 = vadd.f32 0.0, %v449
    %v451 = vpop.f32.mrb[0].mxu0
    %v452 = vpop.f32.mrb[0].mxu0
    %v453 = vadd.f32 0.0, %v452
    %v454 = vpop.f32.mrb[0].mxu0
    %455 = vmatprep.mubr.bf16.mxu0 0
    %456 = vmatmul.mubr.bf16.gmra.mrb[0].mxu0 %v238
    %v457 = vpop.f32.mrb[0].mxu0
    %v458 = vadd.f32 0.0, %v457
    %v459 = vpop.f32.mrb[0].mxu0
    %v460 = vpop.f32.mrb[0].mxu0
    %v461 = vadd.f32 0.0, %v460
    %v462 = vpop.f32.mrb[0].mxu0
    %463 = vdwg.mxu0
    %v464 = vadd.f32 %v338, %v341
    %v465 = vadd.f32 %v464, %v346
    %v466 = vadd.f32 %v465, %v349
    %v467 = vadd.f32 %v466, %v354
    %v468 = vadd.f32 %v467, %v357
    %v469 = vadd.f32 %v468, %v362
    %v470 = vadd.f32 %v469, %v365
    %v471 = vadd.f32 %v470, %v370
    %v472 = vadd.f32 %v471, %v373
    %v473 = vadd.f32 %v472, %v378
    %v474 = vadd.f32 %v473, %v381
    %v475 = vadd.f32 %v474, %v386
    %v476 = vadd.f32 %v475, %v389
    %v477 = vadd.f32 %v476, %v394
    %v478 = vadd.f32 %v477, %v397
    %v479 = vadd.f32 %v478, %v402
    %v480 = vadd.f32 %v479, %v405
    %v481 = vadd.f32 %v480, %v410
    %v482 = vadd.f32 %v481, %v413
    %v483 = vadd.f32 %v482, %v418
    %v484 = vadd.f32 %v483, %v421
    %v485 = vadd.f32 %v484, %v426
    %v486 = vadd.f32 %v485, %v429
    %v487 = vadd.f32 %v486, %v434
    %v488 = vadd.f32 %v487, %v437
    %v489 = vadd.f32 %v488, %v442
    %v490 = vadd.f32 %v489, %v445
    %v491 = vadd.f32 %v490, %v450
    %v492 = vadd.f32 %v491, %v453
    %v493 = vadd.f32 %v492, %v458
    %v494 = vadd.f32 %v493, %v461
    %v495 = vrot.slane %v494, 4
    %v496 = vadd.f32 %v494, %v495
    %v497 = vrot.slane %v496, 2
    %v498 = vadd.f32 %v496, %v497
    %v499 = vrot.slane %v498, 1
    %v500 = vadd.f32 %v498, %v499
    %v501 = vrcp.pop 256.0
    %v502 = vmul.f32 %v500, %v501
    %v503 = vsub.f32 %v338, %v502
    %v504 = vsub.f32 %v341, %v502
    %v505 = vsub.f32 %v346, %v502
    %v506 = vsub.f32 %v349, %v502
    %v507 = vsub.f32 %v354, %v502
    %v508 = vsub.f32 %v357, %v502
    %v509 = vsub.f32 %v362, %v502
    %v510 = vsub.f32 %v365, %v502
    %v511 = vsub.f32 %v370, %v502
    %v512 = vsub.f32 %v373, %v502
    %v513 = vsub.f32 %v378, %v502
    %v514 = vsub.f32 %v381, %v502
    %v515 = vsub.f32 %v386, %v502
    %v516 = vsub.f32 %v389, %v502
    %v517 = vsub.f32 %v394, %v502
    %v518 = vsub.f32 %v397, %v502
    %v519 = vsub.f32 %v402, %v502
    %v520 = vsub.f32 %v405, %v502
    %v521 = vsub.f32 %v410, %v502
    %v522 = vsub.f32 %v413, %v502
    %v523 = vsub.f32 %v418, %v502
    %v524 = vsub.f32 %v421, %v502
    %v525 = vsub.f32 %v426, %v502
    %v526 = vsub.f32 %v429, %v502
    %v527 = vsub.f32 %v434, %v502
    %v528 = vsub.f32 %v437, %v502
    %v529 = vsub.f32 %v442, %v502
    %v530 = vsub.f32 %v445, %v502
    %v531 = vsub.f32 %v450, %v502
    %v532 = vsub.f32 %v453, %v502
    %v533 = vsub.f32 %v458, %v502
    %v534 = vsub.f32 %v461, %v502
    %v535 = vmul.f32 %v503, %v503
    %v536 = vmul.f32 %v504, %v504
    %v537 = vmul.f32 %v505, %v505
    %v538 = vmul.f32 %v506, %v506
    %v539 = vmul.f32 %v507, %v507
    %v540 = vmul.f32 %v508, %v508
    %v541 = vmul.f32 %v509, %v509
    %v542 = vmul.f32 %v510, %v510
    %v543 = vmul.f32 %v511, %v511
    %v544 = vmul.f32 %v512, %v512
    %v545 = vmul.f32 %v513, %v513
    %v546 = vmul.f32 %v514, %v514
    %v547 = vmul.f32 %v515, %v515
    %v548 = vmul.f32 %v516, %v516
    %v549 = vmul.f32 %v517, %v517
    %v550 = vmul.f32 %v518, %v518
    %v551 = vmul.f32 %v519, %v519
    %v552 = vmul.f32 %v520, %v520
    %v553 = vmul.f32 %v521, %v521
    %v554 = vmul.f32 %v522, %v522
    %v555 = vmul.f32 %v523, %v523
    %v556 = vmul.f32 %v524, %v524
    %v557 = vmul.f32 %v525, %v525
    %v558 = vmul.f32 %v526, %v526
    %v559 = vmul.f32 %v527, %v527
    %v560 = vmul.f32 %v528, %v528
    %v561 = vmul.f32 %v529, %v529
    %v562 = vmul.f32 %v530, %v530
    %v563 = vmul.f32 %v531, %v531
    %v564 = vmul.f32 %v532, %v532
    %v565 = vmul.f32 %v533, %v533
    %v566 = vmul.f32 %v534, %v534
    %v567 = vadd.f32 %v535, %v536
    %v568 = vadd.f32 %v567, %v537
    %v569 = vadd.f32 %v568, %v538
    %v570 = vadd.f32 %v569, %v539
    %v571 = vadd.f32 %v570, %v540
    %v572 = vadd.f32 %v571, %v541
    %v573 = vadd.f32 %v572, %v542
    %v574 = vadd.f32 %v573, %v543
    %v575 = vadd.f32 %v574, %v544
    %v576 = vadd.f32 %v575, %v545
    %v577 = vadd.f32 %v576, %v546
    %v578 = vadd.f32 %v577, %v547
    %v579 = vadd.f32 %v578, %v548
    %v580 = vadd.f32 %v579, %v549
    %v581 = vadd.f32 %v580, %v550
    %v582 = vadd.f32 %v581, %v551
    %v583 = vadd.f32 %v582, %v552
    %v584 = vadd.f32 %v583, %v553
    %v585 = vadd.f32 %v584, %v554
    %v586 = vadd.f32 %v585, %v555
    %v587 = vadd.f32 %v586, %v556
    %v588 = vadd.f32 %v587, %v557
    %v589 = vadd.f32 %v588, %v558
    %v590 = vadd.f32 %v589, %v559
    %v591 = vadd.f32 %v590, %v560
    %v592 = vadd.f32 %v591, %v561
    %v593 = vadd.f32 %v592, %v562
    %v594 = vadd.f32 %v593, %v563
    %v595 = vadd.f32 %v594, %v564
    %v596 = vadd.f32 %v595, %v565
    %v597 = vadd.f32 %v596, %v566
    %v598 = vrot.slane %v597, 4
    %v599 = vadd.f32 %v597, %v598
    %v600 = vrot.slane %v599, 2
    %v601 = vadd.f32 %v599, %v600
    %v602 = vrot.slane %v601, 1
    %v603 = vadd.f32 %v601, %v602
    %v604 = vmul.f32 %v603, %v501
    %v605 = vld [vmem:[%s2] sm:$0x1]
    %v606 = vadd.f32 %v604, 1e-05
    %v607 = vrsqrt.pop %v606
    %v608 = vmul.f32 %v503, %v607
    %v609 = vmul.f32 %v504, %v607
    %v610 = vmul.f32 %v505, %v607
    %v611 = vmul.f32 %v506, %v607
    %v612 = vmul.f32 %v507, %v607
    %v613 = vmul.f32 %v508, %v607
    %v614 = vmul.f32 %v509, %v607
    %v615 = vmul.f32 %v510, %v607
    %v616 = vmul.f32 %v511, %v607
    %v617 = vmul.f32 %v512, %v607
    %v618 = vmul.f32 %v513, %v607
    %v619 = vmul.f32 %v514, %v607
    %v620 = vmul.f32 %v515, %v607
    %v621 = vmul.f32 %v516, %v607
    %v622 = vmul.f32 %v517, %v607
    %v623 = vmul.f32 %v518, %v607
    %v624 = vmul.f32 %v519, %v607
    %v625 = vmul.f32 %v520, %v607
    %v626 = vmul.f32 %v521, %v607
    %v627 = vmul.f32 %v522, %v607
    %v628 = vmul.f32 %v523, %v607
    %v629 = vmul.f32 %v524, %v607
    %v630 = vmul.f32 %v525, %v607
    %v631 = vmul.f32 %v526, %v607
    %v632 = vmul.f32 %v527, %v607
    %v633 = vmul.f32 %v528, %v607
    %v634 = vmul.f32 %v529, %v607
    %v635 = vmul.f32 %v530, %v607
    %v636 = vmul.f32 %v531, %v607
    %v637 = vmul.f32 %v532, %v607
    %v638 = vmul.f32 %v533, %v607
    %v639 = vmul.f32 %v534, %v607
    %v641 = vlaneseq
    %v642 = vshrl.u32 %v641, 7
    %v643 = vsub.s32 0, %v642
    %v644 = vrot.slane %v605, %v643
    %v646 = vmul.f32 %v644, %v608
    %v647 = vmul.f32 %v644, %v609
    %v648 = vmul.f32 %v644, %v610
    %v649 = vmul.f32 %v644, %v611
    %v650 = vmul.f32 %v644, %v612
    %v651 = vmul.f32 %v644, %v613
    %v652 = vmul.f32 %v644, %v614
    %v653 = vmul.f32 %v644, %v615
    %v654 = vmul.f32 %v644, %v616
    %v655 = vmul.f32 %v644, %v617
    %v656 = vmul.f32 %v644, %v618
    %v657 = vmul.f32 %v644, %v619
    %v658 = vmul.f32 %v644, %v620
    %v659 = vmul.f32 %v644, %v621
    %v660 = vmul.f32 %v644, %v622
    %v661 = vmul.f32 %v644, %v623
    %v662 = vmul.f32 %v644, %v624
    %v663 = vmul.f32 %v644, %v625
    %v664 = vmul.f32 %v644, %v626
    %v665 = vmul.f32 %v644, %v627
    %v666 = vmul.f32 %v644, %v628
    %v667 = vmul.f32 %v644, %v629
    %v668 = vmul.f32 %v644, %v630
    %v669 = vmul.f32 %v644, %v631
    %v670 = vmul.f32 %v644, %v632
    %v671 = vmul.f32 %v644, %v633
    %v672 = vmul.f32 %v644, %v634
    %v673 = vmul.f32 %v644, %v635
    %v674 = vmul.f32 %v644, %v636
    %v675 = vmul.f32 %v644, %v637
    %v676 = vmul.f32 %v644, %v638
    %v677 = vmul.f32 %v644, %v639
    %v678 = vld [vmem:[%s3] sm:$0x1]
    %v680 = vlaneseq
    %v681 = vshrl.u32 %v680, 7
    %v682 = vsub.s32 0, %v681
    %v683 = vrot.slane %v678, %v682
    %v685 = vadd.f32 %v646, %v683
    %v686 = vadd.f32 %v647, %v683
    %v687 = vadd.f32 %v648, %v683
    %v688 = vadd.f32 %v649, %v683
    %v689 = vadd.f32 %v650, %v683
    %v690 = vadd.f32 %v651, %v683
    %v691 = vadd.f32 %v652, %v683
    %v692 = vadd.f32 %v653, %v683
    %v693 = vadd.f32 %v654, %v683
    %v694 = vadd.f32 %v655, %v683
    %v695 = vadd.f32 %v656, %v683
    %v696 = vadd.f32 %v657, %v683
    %v697 = vadd.f32 %v658, %v683
    %v698 = vadd.f32 %v659, %v683
    %v699 = vadd.f32 %v660, %v683
    %v700 = vadd.f32 %v661, %v683
    %v701 = vadd.f32 %v662, %v683
    %v702 = vadd.f32 %v663, %v683
    %v703 = vadd.f32 %v664, %v683
    %v704 = vadd.f32 %v665, %v683
    %v705 = vadd.f32 %v666, %v683
    %v706 = vadd.f32 %v667, %v683
    %v707 = vadd.f32 %v668, %v683
    %v708 = vadd.f32 %v669, %v683
    %v709 = vadd.f32 %v670, %v683
    %v710 = vadd.f32 %v671, %v683
    %v711 = vadd.f32 %v672, %v683
    %v712 = vadd.f32 %v673, %v683
    %v713 = vadd.f32 %v674, %v683
    %v714 = vadd.f32 %v675, %v683
    %v715 = vadd.f32 %v676, %v683
    %v716 = vadd.f32 %v677, %v683
    %v717 = vmul.f32 %v685, 0.2
    %v718 = vmul.f32 %v686, 0.2
    %v719 = vmul.f32 %v687, 0.2
    %v720 = vmul.f32 %v688, 0.2
    %v721 = vmul.f32 %v689, 0.2
    %v722 = vmul.f32 %v690, 0.2
    %v723 = vmul.f32 %v691, 0.2
    %v724 = vmul.f32 %v692, 0.2
    %v725 = vmul.f32 %v693, 0.2
    %v726 = vmul.f32 %v694, 0.2
    %v727 = vmul.f32 %v695, 0.2
    %v728 = vmul.f32 %v696, 0.2
    %v729 = vmul.f32 %v697, 0.2
    %v730 = vmul.f32 %v698, 0.2
    %v731 = vmul.f32 %v699, 0.2
    %v732 = vmul.f32 %v700, 0.2
    %v733 = vmul.f32 %v701, 0.2
    %v734 = vmul.f32 %v702, 0.2
    %v735 = vmul.f32 %v703, 0.2
    %v736 = vmul.f32 %v704, 0.2
    %v737 = vmul.f32 %v705, 0.2
    %v738 = vmul.f32 %v706, 0.2
    %v739 = vmul.f32 %v707, 0.2
    %v740 = vmul.f32 %v708, 0.2
    %v741 = vmul.f32 %v709, 0.2
    %v742 = vmul.f32 %v710, 0.2
    %v743 = vmul.f32 %v711, 0.2
    %v744 = vmul.f32 %v712, 0.2
    %v745 = vmul.f32 %v713, 0.2
    %v746 = vmul.f32 %v714, 0.2
    %v747 = vmul.f32 %v715, 0.2
    %v748 = vmul.f32 %v716, 0.2
    %v749 = vmax.f32 %v685, %v717
    %v750 = vmax.f32 %v686, %v718
    %v751 = vmax.f32 %v687, %v719
    %v752 = vmax.f32 %v688, %v720
    %v753 = vmax.f32 %v689, %v721
    %v754 = vmax.f32 %v690, %v722
    %v755 = vmax.f32 %v691, %v723
    %v756 = vmax.f32 %v692, %v724
    %v757 = vmax.f32 %v693, %v725
    %v758 = vmax.f32 %v694, %v726
    %v759 = vmax.f32 %v695, %v727
    %v760 = vmax.f32 %v696, %v728
    %v761 = vmax.f32 %v697, %v729
    %v762 = vmax.f32 %v698, %v730
    %v763 = vmax.f32 %v699, %v731
    %v764 = vmax.f32 %v700, %v732
    %v765 = vmax.f32 %v701, %v733
    %v766 = vmax.f32 %v702, %v734
    %v767 = vmax.f32 %v703, %v735
    %v768 = vmax.f32 %v704, %v736
    %v769 = vmax.f32 %v705, %v737
    %v770 = vmax.f32 %v706, %v738
    %v771 = vmax.f32 %v707, %v739
    %v772 = vmax.f32 %v708, %v740
    %v773 = vmax.f32 %v709, %v741
    %v774 = vmax.f32 %v710, %v742
    %v775 = vmax.f32 %v711, %v743
    %v776 = vmax.f32 %v712, %v744
    %v777 = vmax.f32 %v713, %v745
    %v778 = vmax.f32 %v714, %v746
    %v779 = vmax.f32 %v715, %v747
    %v780 = vmax.f32 %v716, %v748
    %v781 = vpack.c.bf16 %v750, %v749
    %v782 = vpack.c.bf16 %v752, %v751
    %v783 = vpack.c.bf16 %v754, %v753
    %v784 = vpack.c.bf16 %v756, %v755
    %v785 = vpack.c.bf16 %v758, %v757
    %v786 = vpack.c.bf16 %v760, %v759
    %v787 = vpack.c.bf16 %v762, %v761
    %v788 = vpack.c.bf16 %v764, %v763
    %v789 = vpack.c.bf16 %v766, %v765
    %v790 = vpack.c.bf16 %v768, %v767
    %v791 = vpack.c.bf16 %v770, %v769
    %v792 = vpack.c.bf16 %v772, %v771
    %v793 = vpack.c.bf16 %v774, %v773
    %v794 = vpack.c.bf16 %v776, %v775
    %v795 = vpack.c.bf16 %v778, %v777
    %v796 = vpack.c.bf16 %v780, %v779
    %v797 = vld [vmem:[#allocation7] sm:$0xf]
    %v798 = vld [vmem:[#allocation7 + $0x4] sm:$0xf]
    %v799 = vld [vmem:[#allocation7 + $0x8] sm:$0xf]
    %v800 = vld [vmem:[#allocation7 + $0xc] sm:$0xf]
    %v801 = vld [vmem:[#allocation7 + $0x10] sm:$0xf]
    %v802 = vld [vmem:[#allocation7 + $0x14] sm:$0xf]
    %v803 = vld [vmem:[#allocation7 + $0x18] sm:$0xf]
    %v804 = vld [vmem:[#allocation7 + $0x1c] sm:$0xf]
    %v805 = vld [vmem:[#allocation7 + $0x20] sm:$0xf]
    %v806 = vld [vmem:[#allocation7 + $0x24] sm:$0xf]
    %v807 = vld [vmem:[#allocation7 + $0x28] sm:$0xf]
    %v808 = vld [vmem:[#allocation7 + $0x2c] sm:$0xf]
    %v809 = vld [vmem:[#allocation7 + $0x30] sm:$0xf]
    %v810 = vld [vmem:[#allocation7 + $0x34] sm:$0xf]
    %v811 = vld [vmem:[#allocation7 + $0x38] sm:$0xf]
    %v812 = vld [vmem:[#allocation7 + $0x3c] sm:$0xf]
    %v829 = vunpack.c.l.b16 %v797
    %v830 = vunpack.c.l.b16 %v798
    %v831 = vunpack.c.l.b16 %v799
    %v832 = vunpack.c.l.b16 %v800
    %v833 = vunpack.c.l.b16 %v801
    %v834 = vunpack.c.l.b16 %v802
    %v835 = vunpack.c.l.b16 %v803
    %v836 = vunpack.c.l.b16 %v804
    %v837 = vunpack.c.l.b16 %v805
    %v838 = vunpack.c.l.b16 %v806
    %v839 = vunpack.c.l.b16 %v807
    %v840 = vunpack.c.l.b16 %v808
    %v841 = vunpack.c.l.b16 %v809
    %v842 = vunpack.c.l.b16 %v810
    %v843 = vunpack.c.l.b16 %v811
    %v844 = vunpack.c.l.b16 %v812
    %v845 = vpack.c.b16 %v830, %v829
    %v846 = vpack.c.b16 %v832, %v831
    %v847 = vpack.c.b16 %v834, %v833
    %v848 = vpack.c.b16 %v836, %v835
    %v849 = vpack.c.b16 %v838, %v837
    %v850 = vpack.c.b16 %v840, %v839
    %v851 = vpack.c.b16 %v842, %v841
    %v852 = vpack.c.b16 %v844, %v843
    %861 = vmatprep.subr.bf16.mxu0 0
    %862 = vmatpush1.bf16.msra.mxu0 %v845
    %863 = vmatprep.subr.bf16.mxu0 0
    %864 = vmatpush1.bf16.msra.mxu0 %v846
    %865 = vmatprep.subr.bf16.mxu0 0
    %866 = vmatpush1.bf16.msra.mxu0 %v847
    %867 = vmatprep.subr.bf16.mxu0 0
    %868 = vmatpush1.bf16.msra.mxu0 %v848
    %869 = vmatprep.subr.bf16.mxu0 0
    %870 = vmatpush1.bf16.msra.mxu0 %v849
    %871 = vmatprep.subr.bf16.mxu0 0
    %872 = vmatpush1.bf16.msra.mxu0 %v850
    %873 = vmatprep.subr.bf16.mxu0 0
    %874 = vmatpush1.bf16.msra.mxu0 %v851
    %875 = vmatprep.subr.bf16.mxu0 0
    %876 = vmatpush1.bf16.msra.mxu0 %v852
    %877 = vmatprep.subr.bf16.mxu0 0
    %878 = vmatpush1.bf16.msra.mxu0 0
    %879 = vmatprep.subr.bf16.mxu0 0
    %880 = vmatpush1.bf16.msra.mxu0 0
    %881 = vmatprep.subr.bf16.mxu0 0
    %882 = vmatpush1.bf16.msra.mxu0 0
    %883 = vmatprep.subr.bf16.mxu0 0
    %884 = vmatpush1.bf16.msra.mxu0 0
    %885 = vmatprep.subr.bf16.mxu0 0
    %886 = vmatpush1.bf16.msra.mxu0 0
    %887 = vmatprep.subr.bf16.mxu0 0
    %888 = vmatpush1.bf16.msra.mxu0 0
    %889 = vmatprep.subr.bf16.mxu0 0
    %890 = vmatpush1.bf16.msra.mxu0 0
    %891 = vmatprep.subr.bf16.mxu0 0
    %892 = vmatpush1.bf16.msra.mxu0 0
    %893 = vmatprep.mubr.bf16.mxu0 0
    %894 = vmatmul.mubr.bf16.gmra.mrb[0].mxu0 %v781
    %v895 = vpop.f32.mrb[0].mxu0
    %v896 = vadd.f32 0.0, %v895
    %v897 = vpop.f32.mrb[0].mxu0
    %v898 = vpop.f32.mrb[0].mxu0
    %v899 = vadd.f32 0.0, %v898
    %v900 = vpop.f32.mrb[0].mxu0
    %901 = vmatprep.mubr.bf16.mxu0 0
    %902 = vmatmul.mubr.bf16.gmra.mrb[0].mxu0 %v782
    %v903 = vpop.f32.mrb[0].mxu0
    %v904 = vadd.f32 0.0, %v903
    %v905 = vpop.f32.mrb[0].mxu0
    %v906 = vpop.f32.mrb[0].mxu0
    %v907 = vadd.f32 0.0, %v906
    %v908 = vpop.f32.mrb[0].mxu0
    %909 = vmatprep.mubr.bf16.mxu0 0
    %910 = vmatmul.mubr.bf16.gmra.mrb[0].mxu0 %v783
    %v911 = vpop.f32.mrb[0].mxu0
    %v912 = vadd.f32 0.0, %v911
    %v913 = vpop.f32.mrb[0].mxu0
    %v914 = vpop.f32.mrb[0].mxu0
    %v915 = vadd.f32 0.0, %v914
    %v916 = vpop.f32.mrb[0].mxu0
    %917 = vmatprep.mubr.bf16.mxu0 0
    %918 = vmatmul.mubr.bf16.gmra.mrb[0].mxu0 %v784
    %v919 = vpop.f32.mrb[0].mxu0
    %v920 = vadd.f32 0.0, %v919
    %v921 = vpop.f32.mrb[0].mxu0
    %v922 = vpop.f32.mrb[0].mxu0
    %v923 = vadd.f32 0.0, %v922
    %v924 = vpop.f32.mrb[0].mxu0
    %925 = vmatprep.mubr.bf16.mxu0 0
    %926 = vmatmul.mubr.bf16.gmra.mrb[0].mxu0 %v785
    %v927 = vpop.f32.mrb[0].mxu0
    %v928 = vadd.f32 0.0, %v927
    %v929 = vpop.f32.mrb[0].mxu0
    %v930 = vpop.f32.mrb[0].mxu0
    %v931 = vadd.f32 0.0, %v930
    %v932 = vpop.f32.mrb[0].mxu0
    %933 = vmatprep.mubr.bf16.mxu0 0
    %934 = vmatmul.mubr.bf16.gmra.mrb[0].mxu0 %v786
    %v935 = vpop.f32.mrb[0].mxu0
    %v936 = vadd.f32 0.0, %v935
    %v937 = vpop.f32.mrb[0].mxu0
    %v938 = vpop.f32.mrb[0].mxu0
    %v939 = vadd.f32 0.0, %v938
    %v940 = vpop.f32.mrb[0].mxu0
    %941 = vmatprep.mubr.bf16.mxu0 0
    %942 = vmatmul.mubr.bf16.gmra.mrb[0].mxu0 %v787
    %v943 = vpop.f32.mrb[0].mxu0
    %v944 = vadd.f32 0.0, %v943
    %v945 = vpop.f32.mrb[0].mxu0
    %v946 = vpop.f32.mrb[0].mxu0
    %v947 = vadd.f32 0.0, %v946
    %v948 = vpop.f32.mrb[0].mxu0
    %949 = vmatprep.mubr.bf16.mxu0 0
    %950 = vmatmul.mubr.bf16.gmra.mrb[0].mxu0 %v788
    %v951 = vpop.f32.mrb[0].mxu0
    %v952 = vadd.f32 0.0, %v951
    %v953 = vpop.f32.mrb[0].mxu0
    %v954 = vpop.f32.mrb[0].mxu0
    %v955 = vadd.f32 0.0, %v954
    %v956 = vpop.f32.mrb[0].mxu0
    %957 = vmatprep.mubr.bf16.mxu0 0
    %958 = vmatmul.mubr.bf16.gmra.mrb[0].mxu0 %v789
    %v959 = vpop.f32.mrb[0].mxu0
    %v960 = vadd.f32 0.0, %v959
    %v961 = vpop.f32.mrb[0].mxu0
    %v962 = vpop.f32.mrb[0].mxu0
    %v963 = vadd.f32 0.0, %v962
    %v964 = vpop.f32.mrb[0].mxu0
    %965 = vmatprep.mubr.bf16.mxu0 0
    %966 = vmatmul.mubr.bf16.gmra.mrb[0].mxu0 %v790
    %v967 = vpop.f32.mrb[0].mxu0
    %v968 = vadd.f32 0.0, %v967
    %v969 = vpop.f32.mrb[0].mxu0
    %v970 = vpop.f32.mrb[0].mxu0
    %v971 = vadd.f32 0.0, %v970
    %v972 = vpop.f32.mrb[0].mxu0
    %973 = vmatprep.mubr.bf16.mxu0 0
    %974 = vmatmul.mubr.bf16.gmra.mrb[0].mxu0 %v791
    %v975 = vpop.f32.mrb[0].mxu0
    %v976 = vadd.f32 0.0, %v975
    %v977 = vpop.f32.mrb[0].mxu0
    %v978 = vpop.f32.mrb[0].mxu0
    %v979 = vadd.f32 0.0, %v978
    %v980 = vpop.f32.mrb[0].mxu0
    %981 = vmatprep.mubr.bf16.mxu0 0
    %982 = vmatmul.mubr.bf16.gmra.mrb[0].mxu0 %v792
    %v983 = vpop.f32.mrb[0].mxu0
    %v984 = vadd.f32 0.0, %v983
    %v985 = vpop.f32.mrb[0].mxu0
    %v986 = vpop.f32.mrb[0].mxu0
    %v987 = vadd.f32 0.0, %v986
    %v988 = vpop.f32.mrb[0].mxu0
    %989 = vmatprep.mubr.bf16.mxu0 0
    %990 = vmatmul.mubr.bf16.gmra.mrb[0].mxu0 %v793
    %v991 = vpop.f32.mrb[0].mxu0
    %v992 = vadd.f32 0.0, %v991
    %v993 = vpop.f32.mrb[0].mxu0
    %v994 = vpop.f32.mrb[0].mxu0
    %v995 = vadd.f32 0.0, %v994
    %v996 = vpop.f32.mrb[0].mxu0
    %997 = vmatprep.mubr.bf16.mxu0 0
    %998 = vmatmul.mubr.bf16.gmra.mrb[0].mxu0 %v794
    %v999 = vpop.f32.mrb[0].mxu0
    %v1000 = vadd.f32 0.0, %v999
    %v1001 = vpop.f32.mrb[0].mxu0
    %v1002 = vpop.f32.mrb[0].mxu0
    %v1003 = vadd.f32 0.0, %v1002
    %v1004 = vpop.f32.mrb[0].mxu0
    %1005 = vmatprep.mubr.bf16.mxu0 0
    %1006 = vmatmul.mubr.bf16.gmra.mrb[0].mxu0 %v795
    %v1007 = vpop.f32.mrb[0].mxu0
    %v1008 = vadd.f32 0.0, %v1007
    %v1009 = vpop.f32.mrb[0].mxu0
    %v1010 = vpop.f32.mrb[0].mxu0
    %v1011 = vadd.f32 0.0, %v1010
    %v1012 = vpop.f32.mrb[0].mxu0
    %1013 = vmatprep.mubr.bf16.mxu0 0
    %1014 = vmatmul.mubr.bf16.gmra.mrb[0].mxu0 %v796
    %v1015 = vpop.f32.mrb[0].mxu0
    %v1016 = vadd.f32 0.0, %v1015
    %v1017 = vpop.f32.mrb[0].mxu0
    %v1018 = vpop.f32.mrb[0].mxu0
    %v1019 = vadd.f32 0.0, %v1018
    %v1020 = vpop.f32.mrb[0].mxu0
    %1021 = vdwg.mxu0
    %v1022 = vadd.f32 %v896, %v899
    %v1023 = vadd.f32 %v1022, %v904
    %v1024 = vadd.f32 %v1023, %v907
    %v1025 = vadd.f32 %v1024, %v912
    %v1026 = vadd.f32 %v1025, %v915
    %v1027 = vadd.f32 %v1026, %v920
    %v1028 = vadd.f32 %v1027, %v923
    %v1029 = vadd.f32 %v1028, %v928
    %v1030 = vadd.f32 %v1029, %v931
    %v1031 = vadd.f32 %v1030, %v936
    %v1032 = vadd.f32 %v1031, %v939
    %v1033 = vadd.f32 %v1032, %v944
    %v1034 = vadd.f32 %v1033, %v947
    %v1035 = vadd.f32 %v1034, %v952
    %v1036 = vadd.f32 %v1035, %v955
    %v1037 = vadd.f32 %v1036, %v960
    %v1038 = vadd.f32 %v1037, %v963
    %v1039 = vadd.f32 %v1038, %v968
    %v1040 = vadd.f32 %v1039, %v971
    %v1041 = vadd.f32 %v1040, %v976
    %v1042 = vadd.f32 %v1041, %v979
    %v1043 = vadd.f32 %v1042, %v984
    %v1044 = vadd.f32 %v1043, %v987
    %v1045 = vadd.f32 %v1044, %v992
    %v1046 = vadd.f32 %v1045, %v995
    %v1047 = vadd.f32 %v1046, %v1000
    %v1048 = vadd.f32 %v1047, %v1003
    %v1049 = vadd.f32 %v1048, %v1008
    %v1050 = vadd.f32 %v1049, %v1011
    %v1051 = vadd.f32 %v1050, %v1016
    %v1052 = vadd.f32 %v1051, %v1019
    %v1053 = vrot.slane %v1052, 4
    %v1054 = vadd.f32 %v1052, %v1053
    %v1055 = vrot.slane %v1054, 2
    %v1056 = vadd.f32 %v1054, %v1055
    %v1057 = vrot.slane %v1056, 1
    %v1058 = vadd.f32 %v1056, %v1057
    %v1059 = vmul.f32 %v1058, %v501
    %v1060 = vsub.f32 %v896, %v1059
    %v1061 = vsub.f32 %v899, %v1059
    %v1062 = vsub.f32 %v904, %v1059
    %v1063 = vsub.f32 %v907, %v1059
    %v1064 = vsub.f32 %v912, %v1059
    %v1065 = vsub.f32 %v915, %v1059
    %v1066 = vsub.f32 %v920, %v1059
    %v1067 = vsub.f32 %v923, %v1059
    %v1068 = vsub.f32 %v928, %v1059
    %v1069 = vsub.f32 %v931, %v1059
    %v1070 = vsub.f32 %v936, %v1059
    %v1071 = vsub.f32 %v939, %v1059
    %v1072 = vsub.f32 %v944, %v1059
    %v1073 = vsub.f32 %v947, %v1059
    %v1074 = vsub.f32 %v952, %v1059
    %v1075 = vsub.f32 %v955, %v1059
    %v1076 = vsub.f32 %v960, %v1059
    %v1077 = vsub.f32 %v963, %v1059
    %v1078 = vsub.f32 %v968, %v1059
    %v1079 = vsub.f32 %v971, %v1059
    %v1080 = vsub.f32 %v976, %v1059
    %v1081 = vsub.f32 %v979, %v1059
    %v1082 = vsub.f32 %v984, %v1059
    %v1083 = vsub.f32 %v987, %v1059
    %v1084 = vsub.f32 %v992, %v1059
    %v1085 = vsub.f32 %v995, %v1059
    %v1086 = vsub.f32 %v1000, %v1059
    %v1087 = vsub.f32 %v1003, %v1059
    %v1088 = vsub.f32 %v1008, %v1059
    %v1089 = vsub.f32 %v1011, %v1059
    %v1090 = vsub.f32 %v1016, %v1059
    %v1091 = vsub.f32 %v1019, %v1059
    %v1092 = vmul.f32 %v1060, %v1060
    %v1093 = vmul.f32 %v1061, %v1061
    %v1094 = vmul.f32 %v1062, %v1062
    %v1095 = vmul.f32 %v1063, %v1063
    %v1096 = vmul.f32 %v1064, %v1064
    %v1097 = vmul.f32 %v1065, %v1065
    %v1098 = vmul.f32 %v1066, %v1066
    %v1099 = vmul.f32 %v1067, %v1067
    %v1100 = vmul.f32 %v1068, %v1068
    %v1101 = vmul.f32 %v1069, %v1069
    %v1102 = vmul.f32 %v1070, %v1070
    %v1103 = vmul.f32 %v1071, %v1071
    %v1104 = vmul.f32 %v1072, %v1072
    %v1105 = vmul.f32 %v1073, %v1073
    %v1106 = vmul.f32 %v1074, %v1074
    %v1107 = vmul.f32 %v1075, %v1075
    %v1108 = vmul.f32 %v1076, %v1076
    %v1109 = vmul.f32 %v1077, %v1077
    %v1110 = vmul.f32 %v1078, %v1078
    %v1111 = vmul.f32 %v1079, %v1079
    %v1112 = vmul.f32 %v1080, %v1080
    %v1113 = vmul.f32 %v1081, %v1081
    %v1114 = vmul.f32 %v1082, %v1082
    %v1115 = vmul.f32 %v1083, %v1083
    %v1116 = vmul.f32 %v1084, %v1084
    %v1117 = vmul.f32 %v1085, %v1085
    %v1118 = vmul.f32 %v1086, %v1086
    %v1119 = vmul.f32 %v1087, %v1087
    %v1120 = vmul.f32 %v1088, %v1088
    %v1121 = vmul.f32 %v1089, %v1089
    %v1122 = vmul.f32 %v1090, %v1090
    %v1123 = vmul.f32 %v1091, %v1091
    %v1124 = vadd.f32 %v1092, %v1093
    %v1125 = vadd.f32 %v1124, %v1094
    %v1126 = vadd.f32 %v1125, %v1095
    %v1127 = vadd.f32 %v1126, %v1096
    %v1128 = vadd.f32 %v1127, %v1097
    %v1129 = vadd.f32 %v1128, %v1098
    %v1130 = vadd.f32 %v1129, %v1099
    %v1131 = vadd.f32 %v1130, %v1100
    %v1132 = vadd.f32 %v1131, %v1101
    %v1133 = vadd.f32 %v1132, %v1102
    %v1134 = vadd.f32 %v1133, %v1103
    %v1135 = vadd.f32 %v1134, %v1104
    %v1136 = vadd.f32 %v1135, %v1105
    %v1137 = vadd.f32 %v1136, %v1106
    %v1138 = vadd.f32 %v1137, %v1107
    %v1139 = vadd.f32 %v1138, %v1108
    %v1140 = vadd.f32 %v1139, %v1109
    %v1141 = vadd.f32 %v1140, %v1110
    %v1142 = vadd.f32 %v1141, %v1111
    %v1143 = vadd.f32 %v1142, %v1112
    %v1144 = vadd.f32 %v1143, %v1113
    %v1145 = vadd.f32 %v1144, %v1114
    %v1146 = vadd.f32 %v1145, %v1115
    %v1147 = vadd.f32 %v1146, %v1116
    %v1148 = vadd.f32 %v1147, %v1117
    %v1149 = vadd.f32 %v1148, %v1118
    %v1150 = vadd.f32 %v1149, %v1119
    %v1151 = vadd.f32 %v1150, %v1120
    %v1152 = vadd.f32 %v1151, %v1121
    %v1153 = vadd.f32 %v1152, %v1122
    %v1154 = vadd.f32 %v1153, %v1123
    %v1155 = vrot.slane %v1154, 4
    %v1156 = vadd.f32 %v1154, %v1155
    %v1157 = vrot.slane %v1156, 2
    %v1158 = vadd.f32 %v1156, %v1157
    %v1159 = vrot.slane %v1158, 1
    %v1160 = vadd.f32 %v1158, %v1159
    %v1161 = vmul.f32 %v1160, %v501
    %v1162 = vld [vmem:[%s5] sm:$0x1]
    %v1163 = vadd.f32 %v1161, 1e-05
    %v1164 = vrsqrt.pop %v1163
    %v1165 = vmul.f32 %v1060, %v1164
    %v1166 = vmul.f32 %v1061, %v1164
    %v1167 = vmul.f32 %v1062, %v1164
    %v1168 = vmul.f32 %v1063, %v1164
    %v1169 = vmul.f32 %v1064, %v1164
    %v1170 = vmul.f32 %v1065, %v1164
    %v1171 = vmul.f32 %v1066, %v1164
    %v1172 = vmul.f32 %v1067, %v1164
    %v1173 = vmul.f32 %v1068, %v1164
    %v1174 = vmul.f32 %v1069, %v1164
    %v1175 = vmul.f32 %v1070, %v1164
    %v1176 = vmul.f32 %v1071, %v1164
    %v1177 = vmul.f32 %v1072, %v1164
    %v1178 = vmul.f32 %v1073, %v1164
    %v1179 = vmul.f32 %v1074, %v1164
    %v1180 = vmul.f32 %v1075, %v1164
    %v1181 = vmul.f32 %v1076, %v1164
    %v1182 = vmul.f32 %v1077, %v1164
    %v1183 = vmul.f32 %v1078, %v1164
    %v1184 = vmul.f32 %v1079, %v1164
    %v1185 = vmul.f32 %v1080, %v1164
    %v1186 = vmul.f32 %v1081, %v1164
    %v1187 = vmul.f32 %v1082, %v1164
    %v1188 = vmul.f32 %v1083, %v1164
    %v1189 = vmul.f32 %v1084, %v1164
    %v1190 = vmul.f32 %v1085, %v1164
    %v1191 = vmul.f32 %v1086, %v1164
    %v1192 = vmul.f32 %v1087, %v1164
    %v1193 = vmul.f32 %v1088, %v1164
    %v1194 = vmul.f32 %v1089, %v1164
    %v1195 = vmul.f32 %v1090, %v1164
    %v1196 = vmul.f32 %v1091, %v1164
    %v1198 = vlaneseq
    %v1199 = vshrl.u32 %v1198, 7
    %v1200 = vsub.s32 0, %v1199
    %v1201 = vrot.slane %v1162, %v1200
    %v1203 = vmul.f32 %v1201, %v1165
    %v1204 = vmul.f32 %v1201, %v1166
    %v1205 = vmul.f32 %v1201, %v1167
    %v1206 = vmul.f32 %v1201, %v1168
    %v1207 = vmul.f32 %v1201, %v1169
    %v1208 = vmul.f32 %v1201, %v1170
    %v1209 = vmul.f32 %v1201, %v1171
    %v1210 = vmul.f32 %v1201, %v1172
    %v1211 = vmul.f32 %v1201, %v1173
    %v1212 = vmul.f32 %v1201, %v1174
    %v1213 = vmul.f32 %v1201, %v1175
    %v1214 = vmul.f32 %v1201, %v1176
    %v1215 = vmul.f32 %v1201, %v1177
    %v1216 = vmul.f32 %v1201, %v1178
    %v1217 = vmul.f32 %v1201, %v1179
    %v1218 = vmul.f32 %v1201, %v1180
    %v1219 = vmul.f32 %v1201, %v1181
    %v1220 = vmul.f32 %v1201, %v1182
    %v1221 = vmul.f32 %v1201, %v1183
    %v1222 = vmul.f32 %v1201, %v1184
    %v1223 = vmul.f32 %v1201, %v1185
    %v1224 = vmul.f32 %v1201, %v1186
    %v1225 = vmul.f32 %v1201, %v1187
    %v1226 = vmul.f32 %v1201, %v1188
    %v1227 = vmul.f32 %v1201, %v1189
    %v1228 = vmul.f32 %v1201, %v1190
    %v1229 = vmul.f32 %v1201, %v1191
    %v1230 = vmul.f32 %v1201, %v1192
    %v1231 = vmul.f32 %v1201, %v1193
    %v1232 = vmul.f32 %v1201, %v1194
    %v1233 = vmul.f32 %v1201, %v1195
    %v1234 = vmul.f32 %v1201, %v1196
    %v1235 = vld [vmem:[%s6] sm:$0x1]
    %v1237 = vlaneseq
    %v1238 = vshrl.u32 %v1237, 7
    %v1239 = vsub.s32 0, %v1238
    %v1240 = vrot.slane %v1235, %v1239
    %v1242 = vadd.f32 %v1203, %v1240
    %v1243 = vadd.f32 %v1204, %v1240
    %v1244 = vadd.f32 %v1205, %v1240
    %v1245 = vadd.f32 %v1206, %v1240
    %v1246 = vadd.f32 %v1207, %v1240
    %v1247 = vadd.f32 %v1208, %v1240
    %v1248 = vadd.f32 %v1209, %v1240
    %v1249 = vadd.f32 %v1210, %v1240
    %v1250 = vadd.f32 %v1211, %v1240
    %v1251 = vadd.f32 %v1212, %v1240
    %v1252 = vadd.f32 %v1213, %v1240
    %v1253 = vadd.f32 %v1214, %v1240
    %v1254 = vadd.f32 %v1215, %v1240
    %v1255 = vadd.f32 %v1216, %v1240
    %v1256 = vadd.f32 %v1217, %v1240
    %v1257 = vadd.f32 %v1218, %v1240
    %v1258 = vadd.f32 %v1219, %v1240
    %v1259 = vadd.f32 %v1220, %v1240
    %v1260 = vadd.f32 %v1221, %v1240
    %v1261 = vadd.f32 %v1222, %v1240
    %v1262 = vadd.f32 %v1223, %v1240
    %v1263 = vadd.f32 %v1224, %v1240
    %v1264 = vadd.f32 %v1225, %v1240
    %v1265 = vadd.f32 %v1226, %v1240
    %v1266 = vadd.f32 %v1227, %v1240
    %v1267 = vadd.f32 %v1228, %v1240
    %v1268 = vadd.f32 %v1229, %v1240
    %v1269 = vadd.f32 %v1230, %v1240
    %v1270 = vadd.f32 %v1231, %v1240
    %v1271 = vadd.f32 %v1232, %v1240
    %v1272 = vadd.f32 %v1233, %v1240
    %v1273 = vadd.f32 %v1234, %v1240
    %v1274 = vmul.f32 %v1242, 0.2
    %v1275 = vmul.f32 %v1243, 0.2
    %v1276 = vmul.f32 %v1244, 0.2
    %v1277 = vmul.f32 %v1245, 0.2
    %v1278 = vmul.f32 %v1246, 0.2
    %v1279 = vmul.f32 %v1247, 0.2
    %v1280 = vmul.f32 %v1248, 0.2
    %v1281 = vmul.f32 %v1249, 0.2
    %v1282 = vmul.f32 %v1250, 0.2
    %v1283 = vmul.f32 %v1251, 0.2
    %v1284 = vmul.f32 %v1252, 0.2
    %v1285 = vmul.f32 %v1253, 0.2
    %v1286 = vmul.f32 %v1254, 0.2
    %v1287 = vmul.f32 %v1255, 0.2
    %v1288 = vmul.f32 %v1256, 0.2
    %v1289 = vmul.f32 %v1257, 0.2
    %v1290 = vmul.f32 %v1258, 0.2
    %v1291 = vmul.f32 %v1259, 0.2
    %v1292 = vmul.f32 %v1260, 0.2
    %v1293 = vmul.f32 %v1261, 0.2
    %v1294 = vmul.f32 %v1262, 0.2
    %v1295 = vmul.f32 %v1263, 0.2
    %v1296 = vmul.f32 %v1264, 0.2
    %v1297 = vmul.f32 %v1265, 0.2
    %v1298 = vmul.f32 %v1266, 0.2
    %v1299 = vmul.f32 %v1267, 0.2
    %v1300 = vmul.f32 %v1268, 0.2
    %v1301 = vmul.f32 %v1269, 0.2
    %v1302 = vmul.f32 %v1270, 0.2
    %v1303 = vmul.f32 %v1271, 0.2
    %v1304 = vmul.f32 %v1272, 0.2
    %v1305 = vmul.f32 %v1273, 0.2
    %v1306 = vmax.f32 %v1242, %v1274
    %v1307 = vmax.f32 %v1243, %v1275
    %v1308 = vmax.f32 %v1244, %v1276
    %v1309 = vmax.f32 %v1245, %v1277
    %v1310 = vmax.f32 %v1246, %v1278
    %v1311 = vmax.f32 %v1247, %v1279
    %v1312 = vmax.f32 %v1248, %v1280
    %v1313 = vmax.f32 %v1249, %v1281
    %v1314 = vmax.f32 %v1250, %v1282
    %v1315 = vmax.f32 %v1251, %v1283
    %v1316 = vmax.f32 %v1252, %v1284
    %v1317 = vmax.f32 %v1253, %v1285
    %v1318 = vmax.f32 %v1254, %v1286
    %v1319 = vmax.f32 %v1255, %v1287
    %v1320 = vmax.f32 %v1256, %v1288
    %v1321 = vmax.f32 %v1257, %v1289
    %v1322 = vmax.f32 %v1258, %v1290
    %v1323 = vmax.f32 %v1259, %v1291
    %v1324 = vmax.f32 %v1260, %v1292
    %v1325 = vmax.f32 %v1261, %v1293
    %v1326 = vmax.f32 %v1262, %v1294
    %v1327 = vmax.f32 %v1263, %v1295
    %v1328 = vmax.f32 %v1264, %v1296
    %v1329 = vmax.f32 %v1265, %v1297
    %v1330 = vmax.f32 %v1266, %v1298
    %v1331 = vmax.f32 %v1267, %v1299
    %v1332 = vmax.f32 %v1268, %v1300
    %v1333 = vmax.f32 %v1269, %v1301
    %v1334 = vmax.f32 %v1270, %v1302
    %v1335 = vmax.f32 %v1271, %v1303
    %v1336 = vmax.f32 %v1272, %v1304
    %v1337 = vmax.f32 %v1273, %v1305
    %v1338 = vpack.c.bf16 %v1307, %v1306
    %v1339 = vpack.c.bf16 %v1309, %v1308
    %v1340 = vpack.c.bf16 %v1311, %v1310
    %v1341 = vpack.c.bf16 %v1313, %v1312
    %v1342 = vpack.c.bf16 %v1315, %v1314
    %v1343 = vpack.c.bf16 %v1317, %v1316
    %v1344 = vpack.c.bf16 %v1319, %v1318
    %v1345 = vpack.c.bf16 %v1321, %v1320
    %v1346 = vpack.c.bf16 %v1323, %v1322
    %v1347 = vpack.c.bf16 %v1325, %v1324
    %v1348 = vpack.c.bf16 %v1327, %v1326
    %v1349 = vpack.c.bf16 %v1329, %v1328
    %v1350 = vpack.c.bf16 %v1331, %v1330
    %v1351 = vpack.c.bf16 %v1333, %v1332
    %v1352 = vpack.c.bf16 %v1335, %v1334
    %v1353 = vpack.c.bf16 %v1337, %v1336
    %v1354 = vld [vmem:[#allocation8] sm:$0xff]
    %v1355 = vld [vmem:[#allocation8 + $0x8] sm:$0xff]
    %v1356 = vld [vmem:[#allocation8 + $0x10] sm:$0xff]
    %v1357 = vld [vmem:[#allocation8 + $0x18] sm:$0xff]
    %v1358 = vld [vmem:[#allocation8 + $0x20] sm:$0xff]
    %v1359 = vld [vmem:[#allocation8 + $0x28] sm:$0xff]
    %v1360 = vld [vmem:[#allocation8 + $0x30] sm:$0xff]
    %v1361 = vld [vmem:[#allocation8 + $0x38] sm:$0xff]
    %v1362 = vld [vmem:[#allocation8 + $0x40] sm:$0xff]
    %v1363 = vld [vmem:[#allocation8 + $0x48] sm:$0xff]
    %v1364 = vld [vmem:[#allocation8 + $0x50] sm:$0xff]
    %v1365 = vld [vmem:[#allocation8 + $0x58] sm:$0xff]
    %v1366 = vld [vmem:[#allocation8 + $0x60] sm:$0xff]
    %v1367 = vld [vmem:[#allocation8 + $0x68] sm:$0xff]
    %v1368 = vld [vmem:[#allocation8 + $0x70] sm:$0xff]
    %v1369 = vld [vmem:[#allocation8 + $0x78] sm:$0xff]
    %v1386 = vunpack.c.l.b16 %v1354
    %v1387 = vunpack.c.h.b16 %v1354
    %v1388 = vunpack.c.l.b16 %v1355
    %v1389 = vunpack.c.h.b16 %v1355
    %v1390 = vunpack.c.l.b16 %v1356
    %v1391 = vunpack.c.h.b16 %v1356
    %v1392 = vunpack.c.l.b16 %v1357
    %v1393 = vunpack.c.h.b16 %v1357
    %v1394 = vunpack.c.l.b16 %v1358
    %v1395 = vunpack.c.h.b16 %v1358
    %v1396 = vunpack.c.l.b16 %v1359
    %v1397 = vunpack.c.h.b16 %v1359
    %v1398 = vunpack.c.l.b16 %v1360
    %v1399 = vunpack.c.h.b16 %v1360
    %v1400 = vunpack.c.l.b16 %v1361
    %v1401 = vunpack.c.h.b16 %v1361
    %v1402 = vunpack.c.l.b16 %v1362
    %v1403 = vunpack.c.h.b16 %v1362
    %v1404 = vunpack.c.l.b16 %v1363
    %v1405 = vunpack.c.h.b16 %v1363
    %v1406 = vunpack.c.l.b16 %v1364
    %v1407 = vunpack.c.h.b16 %v1364
    %v1408 = vunpack.c.l.b16 %v1365
    %v1409 = vunpack.c.h.b16 %v1365
    %v1410 = vunpack.c.l.b16 %v1366
    %v1411 = vunpack.c.h.b16 %v1366
    %v1412 = vunpack.c.l.b16 %v1367
    %v1413 = vunpack.c.h.b16 %v1367
    %v1414 = vunpack.c.l.b16 %v1368
    %v1415 = vunpack.c.h.b16 %v1368
    %v1416 = vunpack.c.l.b16 %v1369
    %v1417 = vunpack.c.h.b16 %v1369
    %v1418 = vpack.c.b16 %v1388, %v1386
    %v1419 = vpack.c.b16 %v1389, %v1387
    %v1420 = vpack.c.b16 %v1392, %v1390
    %v1421 = vpack.c.b16 %v1393, %v1391
    %v1422 = vpack.c.b16 %v1396, %v1394
    %v1423 = vpack.c.b16 %v1397, %v1395
    %v1424 = vpack.c.b16 %v1400, %v1398
    %v1425 = vpack.c.b16 %v1401, %v1399
    %v1426 = vpack.c.b16 %v1404, %v1402
    %v1427 = vpack.c.b16 %v1405, %v1403
    %v1428 = vpack.c.b16 %v1408, %v1406
    %v1429 = vpack.c.b16 %v1409, %v1407
    %v1430 = vpack.c.b16 %v1412, %v1410
    %v1431 = vpack.c.b16 %v1413, %v1411
    %v1432 = vpack.c.b16 %v1416, %v1414
    %v1433 = vpack.c.b16 %v1417, %v1415
    %1450 = vmatprep.subr.bf16.mxu0 %v1419
    %1451 = vmatpush1.bf16.msra.mxu0 %v1418
    %1452 = vmatprep.subr.bf16.mxu0 %v1421
    %1453 = vmatpush1.bf16.msra.mxu0 %v1420
    %1454 = vmatprep.subr.bf16.mxu0 %v1423
    %1455 = vmatpush1.bf16.msra.mxu0 %v1422
    %1456 = vmatprep.subr.bf16.mxu0 %v1425
    %1457 = vmatpush1.bf16.msra.mxu0 %v1424
    %1458 = vmatprep.subr.bf16.mxu0 %v1427
    %1459 = vmatpush1.bf16.msra.mxu0 %v1426
    %1460 = vmatprep.subr.bf16.mxu0 %v1429
    %1461 = vmatpush1.bf16.msra.mxu0 %v1428
    %1462 = vmatprep.subr.bf16.mxu0 %v1431
    %1463 = vmatpush1.bf16.msra.mxu0 %v1430
    %1464 = vmatprep.subr.bf16.mxu0 %v1433
    %1465 = vmatpush1.bf16.msra.mxu0 %v1432
    %1466 = vmatprep.subr.bf16.mxu0 0
    %1467 = vmatpush1.bf16.msra.mxu0 0
    %1468 = vmatprep.subr.bf16.mxu0 0
    %1469 = vmatpush1.bf16.msra.mxu0 0
    %1470 = vmatprep.subr.bf16.mxu0 0
    %1471 = vmatpush1.bf16.msra.mxu0 0
    %1472 = vmatprep.subr.bf16.mxu0 0
    %1473 = vmatpush1.bf16.msra.mxu0 0
    %1474 = vmatprep.subr.bf16.mxu0 0
    %1475 = vmatpush1.bf16.msra.mxu0 0
    %1476 = vmatprep.subr.bf16.mxu0 0
    %1477 = vmatpush1.bf16.msra.mxu0 0
    %1478 = vmatprep.subr.bf16.mxu0 0
    %1479 = vmatpush1.bf16.msra.mxu0 0
    %1480 = vmatprep.subr.bf16.mxu0 0
    %1481 = vmatpush1.bf16.msra.mxu0 0
    %1482 = vmatprep.mubr.bf16.mxu0 0
    %1483 = vmatmul.mubr.bf16.gmra.mrb[0].mxu0 %v1338
    %v1484 = vpop.f32.mrb[0].mxu0
    %v1485 = vadd.f32 0.0, %v1484
    %v1486 = vpop.f32.mrb[0].mxu0
    %v1487 = vadd.f32 0.0, %v1486
    %v1488 = vpop.f32.mrb[0].mxu0
    %v1489 = vadd.f32 0.0, %v1488
    %v1490 = vpop.f32.mrb[0].mxu0
    %v1491 = vadd.f32 0.0, %v1490
    %1492 = vmatprep.mubr.bf16.mxu0 0
    %1493 = vmatmul.mubr.bf16.gmra.mrb[0].mxu0 %v1339
    %v1494 = vpop.f32.mrb[0].mxu0
    %v1495 = vadd.f32 0.0, %v1494
    %v1496 = vpop.f32.mrb[0].mxu0
    %v1497 = vadd.f32 0.0, %v1496
    %v1498 = vpop.f32.mrb[0].mxu0
    %v1499 = vadd.f32 0.0, %v1498
    %v1500 = vpop.f32.mrb[0].mxu0
    %v1501 = vadd.f32 0.0, %v1500
    %1502 = vmatprep.mubr.bf16.mxu0 0
    %1503 = vmatmul.mubr.bf16.gmra.mrb[0].mxu0 %v1340
    %v1504 = vpop.f32.mrb[0].mxu0
    %v1505 = vadd.f32 0.0, %v1504
    %v1506 = vpop.f32.mrb[0].mxu0
    %v1507 = vadd.f32 0.0, %v1506
    %v1508 = vpop.f32.mrb[0].mxu0
    %v1509 = vadd.f32 0.0, %v1508
    %v1510 = vpop.f32.mrb[0].mxu0
    %v1511 = vadd.f32 0.0, %v1510
    %1512 = vmatprep.mubr.bf16.mxu0 0
    %1513 = vmatmul.mubr.bf16.gmra.mrb[0].mxu0 %v1341
    %v1514 = vpop.f32.mrb[0].mxu0
    %v1515 = vadd.f32 0.0, %v1514
    %v1516 = vpop.f32.mrb[0].mxu0
    %v1517 = vadd.f32 0.0, %v1516
    %v1518 = vpop.f32.mrb[0].mxu0
    %v1519 = vadd.f32 0.0, %v1518
    %v1520 = vpop.f32.mrb[0].mxu0
    %v1521 = vadd.f32 0.0, %v1520
    %1522 = vmatprep.mubr.bf16.mxu0 0
    %1523 = vmatmul.mubr.bf16.gmra.mrb[0].mxu0 %v1342
    %v1524 = vpop.f32.mrb[0].mxu0
    %v1525 = vadd.f32 0.0, %v1524
    %v1526 = vpop.f32.mrb[0].mxu0
    %v1527 = vadd.f32 0.0, %v1526
    %v1528 = vpop.f32.mrb[0].mxu0
    %v1529 = vadd.f32 0.0, %v1528
    %v1530 = vpop.f32.mrb[0].mxu0
    %v1531 = vadd.f32 0.0, %v1530
    %1532 = vmatprep.mubr.bf16.mxu0 0
    %1533 = vmatmul.mubr.bf16.gmra.mrb[0].mxu0 %v1343
    %v1534 = vpop.f32.mrb[0].mxu0
    %v1535 = vadd.f32 0.0, %v1534
    %v1536 = vpop.f32.mrb[0].mxu0
    %v1537 = vadd.f32 0.0, %v1536
    %v1538 = vpop.f32.mrb[0].mxu0
    %v1539 = vadd.f32 0.0, %v1538
    %v1540 = vpop.f32.mrb[0].mxu0
    %v1541 = vadd.f32 0.0, %v1540
    %1542 = vmatprep.mubr.bf16.mxu0 0
    %1543 = vmatmul.mubr.bf16.gmra.mrb[0].mxu0 %v1344
    %v1544 = vpop.f32.mrb[0].mxu0
    %v1545 = vadd.f32 0.0, %v1544
    %v1546 = vpop.f32.mrb[0].mxu0
    %v1547 = vadd.f32 0.0, %v1546
    %v1548 = vpop.f32.mrb[0].mxu0
    %v1549 = vadd.f32 0.0, %v1548
    %v1550 = vpop.f32.mrb[0].mxu0
    %v1551 = vadd.f32 0.0, %v1550
    %1552 = vmatprep.mubr.bf16.mxu0 0
    %1553 = vmatmul.mubr.bf16.gmra.mrb[0].mxu0 %v1345
    %v1554 = vpop.f32.mrb[0].mxu0
    %v1555 = vadd.f32 0.0, %v1554
    %v1556 = vpop.f32.mrb[0].mxu0
    %v1557 = vadd.f32 0.0, %v1556
    %v1558 = vpop.f32.mrb[0].mxu0
    %v1559 = vadd.f32 0.0, %v1558
    %v1560 = vpop.f32.mrb[0].mxu0
    %v1561 = vadd.f32 0.0, %v1560
    %1562 = vmatprep.mubr.bf16.mxu0 0
    %1563 = vmatmul.mubr.bf16.gmra.mrb[0].mxu0 %v1346
    %v1564 = vpop.f32.mrb[0].mxu0
    %v1565 = vadd.f32 0.0, %v1564
    %v1566 = vpop.f32.mrb[0].mxu0
    %v1567 = vadd.f32 0.0, %v1566
    %v1568 = vpop.f32.mrb[0].mxu0
    %v1569 = vadd.f32 0.0, %v1568
    %v1570 = vpop.f32.mrb[0].mxu0
    %v1571 = vadd.f32 0.0, %v1570
    %1572 = vmatprep.mubr.bf16.mxu0 0
    %1573 = vmatmul.mubr.bf16.gmra.mrb[0].mxu0 %v1347
    %v1574 = vpop.f32.mrb[0].mxu0
    %v1575 = vadd.f32 0.0, %v1574
    %v1576 = vpop.f32.mrb[0].mxu0
    %v1577 = vadd.f32 0.0, %v1576
    %v1578 = vpop.f32.mrb[0].mxu0
    %v1579 = vadd.f32 0.0, %v1578
    %v1580 = vpop.f32.mrb[0].mxu0
    %v1581 = vadd.f32 0.0, %v1580
    %1582 = vmatprep.mubr.bf16.mxu0 0
    %1583 = vmatmul.mubr.bf16.gmra.mrb[0].mxu0 %v1348
    %v1584 = vpop.f32.mrb[0].mxu0
    %v1585 = vadd.f32 0.0, %v1584
    %v1586 = vpop.f32.mrb[0].mxu0
    %v1587 = vadd.f32 0.0, %v1586
    %v1588 = vpop.f32.mrb[0].mxu0
    %v1589 = vadd.f32 0.0, %v1588
    %v1590 = vpop.f32.mrb[0].mxu0
    %v1591 = vadd.f32 0.0, %v1590
    %1592 = vmatprep.mubr.bf16.mxu0 0
    %1593 = vmatmul.mubr.bf16.gmra.mrb[0].mxu0 %v1349
    %v1594 = vpop.f32.mrb[0].mxu0
    %v1595 = vadd.f32 0.0, %v1594
    %v1596 = vpop.f32.mrb[0].mxu0
    %v1597 = vadd.f32 0.0, %v1596
    %v1598 = vpop.f32.mrb[0].mxu0
    %v1599 = vadd.f32 0.0, %v1598
    %v1600 = vpop.f32.mrb[0].mxu0
    %v1601 = vadd.f32 0.0, %v1600
    %1602 = vmatprep.mubr.bf16.mxu0 0
    %1603 = vmatmul.mubr.bf16.gmra.mrb[0].mxu0 %v1350
    %v1604 = vpop.f32.mrb[0].mxu0
    %v1605 = vadd.f32 0.0, %v1604
    %v1606 = vpop.f32.mrb[0].mxu0
    %v1607 = vadd.f32 0.0, %v1606
    %v1608 = vpop.f32.mrb[0].mxu0
    %v1609 = vadd.f32 0.0, %v1608
    %v1610 = vpop.f32.mrb[0].mxu0
    %v1611 = vadd.f32 0.0, %v1610
    %1612 = vmatprep.mubr.bf16.mxu0 0
    %1613 = vmatmul.mubr.bf16.gmra.mrb[0].mxu0 %v1351
    %v1614 = vpop.f32.mrb[0].mxu0
    %v1615 = vadd.f32 0.0, %v1614
    %v1616 = vpop.f32.mrb[0].mxu0
    %v1617 = vadd.f32 0.0, %v1616
    %v1618 = vpop.f32.mrb[0].mxu0
    %v1619 = vadd.f32 0.0, %v1618
    %v1620 = vpop.f32.mrb[0].mxu0
    %v1621 = vadd.f32 0.0, %v1620
    %1622 = vmatprep.mubr.bf16.mxu0 0
    %1623 = vmatmul.mubr.bf16.gmra.mrb[0].mxu0 %v1352
    %v1624 = vpop.f32.mrb[0].mxu0
    %v1625 = vadd.f32 0.0, %v1624
    %v1626 = vpop.f32.mrb[0].mxu0
    %v1627 = vadd.f32 0.0, %v1626
    %v1628 = vpop.f32.mrb[0].mxu0
    %v1629 = vadd.f32 0.0, %v1628
    %v1630 = vpop.f32.mrb[0].mxu0
    %v1631 = vadd.f32 0.0, %v1630
    %1632 = vmatprep.mubr.bf16.mxu0 0
    %1633 = vmatmul.mubr.bf16.gmra.mrb[0].mxu0 %v1353
    %v1634 = vpop.f32.mrb[0].mxu0
    %v1635 = vadd.f32 0.0, %v1634
    %v1636 = vpop.f32.mrb[0].mxu0
    %v1637 = vadd.f32 0.0, %v1636
    %v1638 = vpop.f32.mrb[0].mxu0
    %v1639 = vadd.f32 0.0, %v1638
    %v1640 = vpop.f32.mrb[0].mxu0
    %v1641 = vadd.f32 0.0, %v1640
    %1642 = vdwg.mxu0
    %v1643 = vadd.f32 %v1485, %v1489
    %v1644 = vadd.f32 %v1643, %v1495
    %v1645 = vadd.f32 %v1644, %v1499
    %v1646 = vadd.f32 %v1645, %v1505
    %v1647 = vadd.f32 %v1646, %v1509
    %v1648 = vadd.f32 %v1647, %v1515
    %v1649 = vadd.f32 %v1648, %v1519
    %v1650 = vadd.f32 %v1649, %v1525
    %v1651 = vadd.f32 %v1650, %v1529
    %v1652 = vadd.f32 %v1651, %v1535
    %v1653 = vadd.f32 %v1652, %v1539
    %v1654 = vadd.f32 %v1653, %v1545
    %v1655 = vadd.f32 %v1654, %v1549
    %v1656 = vadd.f32 %v1655, %v1555
    %v1657 = vadd.f32 %v1656, %v1559
    %v1658 = vadd.f32 %v1657, %v1565
    %v1659 = vadd.f32 %v1658, %v1569
    %v1660 = vadd.f32 %v1659, %v1575
    %v1661 = vadd.f32 %v1660, %v1579
    %v1662 = vadd.f32 %v1661, %v1585
    %v1663 = vadd.f32 %v1662, %v1589
    %v1664 = vadd.f32 %v1663, %v1595
    %v1665 = vadd.f32 %v1664, %v1599
    %v1666 = vadd.f32 %v1665, %v1605
    %v1667 = vadd.f32 %v1666, %v1609
    %v1668 = vadd.f32 %v1667, %v1615
    %v1669 = vadd.f32 %v1668, %v1619
    %v1670 = vadd.f32 %v1669, %v1625
    %v1671 = vadd.f32 %v1670, %v1629
    %v1672 = vadd.f32 %v1671, %v1635
    %v1673 = vadd.f32 %v1672, %v1639
    %v1674 = vrot.slane %v1673, 4
    %v1675 = vadd.f32 %v1673, %v1674
    %v1676 = vrot.slane %v1675, 2
    %v1677 = vadd.f32 %v1675, %v1676
    %v1678 = vrot.slane %v1677, 1
    %v1679 = vadd.f32 %v1677, %v1678
    %v1680 = vadd.f32 %v1487, %v1491
    %v1681 = vadd.f32 %v1680, %v1497
    %v1682 = vadd.f32 %v1681, %v1501
    %v1683 = vadd.f32 %v1682, %v1507
    %v1684 = vadd.f32 %v1683, %v1511
    %v1685 = vadd.f32 %v1684, %v1517
    %v1686 = vadd.f32 %v1685, %v1521
    %v1687 = vadd.f32 %v1686, %v1527
    %v1688 = vadd.f32 %v1687, %v1531
    %v1689 = vadd.f32 %v1688, %v1537
    %v1690 = vadd.f32 %v1689, %v1541
    %v1691 = vadd.f32 %v1690, %v1547
    %v1692 = vadd.f32 %v1691, %v1551
    %v1693 = vadd.f32 %v1692, %v1557
    %v1694 = vadd.f32 %v1693, %v1561
    %v1695 = vadd.f32 %v1694, %v1567
    %v1696 = vadd.f32 %v1695, %v1571
    %v1697 = vadd.f32 %v1696, %v1577
    %v1698 = vadd.f32 %v1697, %v1581
    %v1699 = vadd.f32 %v1698, %v1587
    %v1700 = vadd.f32 %v1699, %v1591
    %v1701 = vadd.f32 %v1700, %v1597
    %v1702 = vadd.f32 %v1701, %v1601
    %v1703 = vadd.f32 %v1702, %v1607
    %v1704 = vadd.f32 %v1703, %v1611
    %v1705 = vadd.f32 %v1704, %v1617
    %v1706 = vadd.f32 %v1705, %v1621
    %v1707 = vadd.f32 %v1706, %v1627
    %v1708 = vadd.f32 %v1707, %v1631
    %v1709 = vadd.f32 %v1708, %v1637
    %v1710 = vadd.f32 %v1709, %v1641
    %v1711 = vrot.slane %v1710, 4
    %v1712 = vadd.f32 %v1710, %v1711
    %v1713 = vrot.slane %v1712, 2
    %v1714 = vadd.f32 %v1712, %v1713
    %v1715 = vrot.slane %v1714, 1
    %v1716 = vadd.f32 %v1714, %v1715
    %v1717 = vmul.f32 %v1679, %v501
    %v1718 = vmul.f32 %v1716, %v501
    %v1719 = vsub.f32 %v1485, %v1717
    %v1720 = vsub.f32 %v1487, %v1718
    %v1721 = vsub.f32 %v1489, %v1717
    %v1722 = vsub.f32 %v1491, %v1718
    %v1723 = vsub.f32 %v1495, %v1717
    %v1724 = vsub.f32 %v1497, %v1718
    %v1725 = vsub.f32 %v1499, %v1717
    %v1726 = vsub.f32 %v1501, %v1718
    %v1727 = vsub.f32 %v1505, %v1717
    %v1728 = vsub.f32 %v1507, %v1718
    %v1729 = vsub.f32 %v1509, %v1717
    %v1730 = vsub.f32 %v1511, %v1718
    %v1731 = vsub.f32 %v1515, %v1717
    %v1732 = vsub.f32 %v1517, %v1718
    %v1733 = vsub.f32 %v1519, %v1717
    %v1734 = vsub.f32 %v1521, %v1718
    %v1735 = vsub.f32 %v1525, %v1717
    %v1736 = vsub.f32 %v1527, %v1718
    %v1737 = vsub.f32 %v1529, %v1717
    %v1738 = vsub.f32 %v1531, %v1718
    %v1739 = vsub.f32 %v1535, %v1717
    %v1740 = vsub.f32 %v1537, %v1718
    %v1741 = vsub.f32 %v1539, %v1717
    %v1742 = vsub.f32 %v1541, %v1718
    %v1743 = vsub.f32 %v1545, %v1717
    %v1744 = vsub.f32 %v1547, %v1718
    %v1745 = vsub.f32 %v1549, %v1717
    %v1746 = vsub.f32 %v1551, %v1718
    %v1747 = vsub.f32 %v1555, %v1717
    %v1748 = vsub.f32 %v1557, %v1718
    %v1749 = vsub.f32 %v1559, %v1717
    %v1750 = vsub.f32 %v1561, %v1718
    %v1751 = vsub.f32 %v1565, %v1717
    %v1752 = vsub.f32 %v1567, %v1718
    %v1753 = vsub.f32 %v1569, %v1717
    %v1754 = vsub.f32 %v1571, %v1718
    %v1755 = vsub.f32 %v1575, %v1717
    %v1756 = vsub.f32 %v1577, %v1718
    %v1757 = vsub.f32 %v1579, %v1717
    %v1758 = vsub.f32 %v1581, %v1718
    %v1759 = vsub.f32 %v1585, %v1717
    %v1760 = vsub.f32 %v1587, %v1718
    %v1761 = vsub.f32 %v1589, %v1717
    %v1762 = vsub.f32 %v1591, %v1718
    %v1763 = vsub.f32 %v1595, %v1717
    %v1764 = vsub.f32 %v1597, %v1718
    %v1765 = vsub.f32 %v1599, %v1717
    %v1766 = vsub.f32 %v1601, %v1718
    %v1767 = vsub.f32 %v1605, %v1717
    %v1768 = vsub.f32 %v1607, %v1718
    %v1769 = vsub.f32 %v1609, %v1717
    %v1770 = vsub.f32 %v1611, %v1718
    %v1771 = vsub.f32 %v1615, %v1717
    %v1772 = vsub.f32 %v1617, %v1718
    %v1773 = vsub.f32 %v1619, %v1717
    %v1774 = vsub.f32 %v1621, %v1718
    %v1775 = vsub.f32 %v1625, %v1717
    %v1776 = vsub.f32 %v1627, %v1718
    %v1777 = vsub.f32 %v1629, %v1717
    %v1778 = vsub.f32 %v1631, %v1718
    %v1779 = vsub.f32 %v1635, %v1717
    %v1780 = vsub.f32 %v1637, %v1718
    %v1781 = vsub.f32 %v1639, %v1717
    %v1782 = vsub.f32 %v1641, %v1718
    %v1783 = vmul.f32 %v1719, %v1719
    %v1784 = vmul.f32 %v1720, %v1720
    %v1785 = vmul.f32 %v1721, %v1721
    %v1786 = vmul.f32 %v1722, %v1722
    %v1787 = vmul.f32 %v1723, %v1723
    %v1788 = vmul.f32 %v1724, %v1724
    %v1789 = vmul.f32 %v1725, %v1725
    %v1790 = vmul.f32 %v1726, %v1726
    %v1791 = vmul.f32 %v1727, %v1727
    %v1792 = vmul.f32 %v1728, %v1728
    %v1793 = vmul.f32 %v1729, %v1729
    %v1794 = vmul.f32 %v1730, %v1730
    %v1795 = vmul.f32 %v1731, %v1731
    %v1796 = vmul.f32 %v1732, %v1732
    %v1797 = vmul.f32 %v1733, %v1733
    %v1798 = vmul.f32 %v1734, %v1734
    %v1799 = vmul.f32 %v1735, %v1735
    %v1800 = vmul.f32 %v1736, %v1736
    %v1801 = vmul.f32 %v1737, %v1737
    %v1802 = vmul.f32 %v1738, %v1738
    %v1803 = vmul.f32 %v1739, %v1739
    %v1804 = vmul.f32 %v1740, %v1740
    %v1805 = vmul.f32 %v1741, %v1741
    %v1806 = vmul.f32 %v1742, %v1742
    %v1807 = vmul.f32 %v1743, %v1743
    %v1808 = vmul.f32 %v1744, %v1744
    %v1809 = vmul.f32 %v1745, %v1745
    %v1810 = vmul.f32 %v1746, %v1746
    %v1811 = vmul.f32 %v1747, %v1747
    %v1812 = vmul.f32 %v1748, %v1748
    %v1813 = vmul.f32 %v1749, %v1749
    %v1814 = vmul.f32 %v1750, %v1750
    %v1815 = vmul.f32 %v1751, %v1751
    %v1816 = vmul.f32 %v1752, %v1752
    %v1817 = vmul.f32 %v1753, %v1753
    %v1818 = vmul.f32 %v1754, %v1754
    %v1819 = vmul.f32 %v1755, %v1755
    %v1820 = vmul.f32 %v1756, %v1756
    %v1821 = vmul.f32 %v1757, %v1757
    %v1822 = vmul.f32 %v1758, %v1758
    %v1823 = vmul.f32 %v1759, %v1759
    %v1824 = vmul.f32 %v1760, %v1760
    %v1825 = vmul.f32 %v1761, %v1761
    %v1826 = vmul.f32 %v1762, %v1762
    %v1827 = vmul.f32 %v1763, %v1763
    %v1828 = vmul.f32 %v1764, %v1764
    %v1829 = vmul.f32 %v1765, %v1765
    %v1830 = vmul.f32 %v1766, %v1766
    %v1831 = vmul.f32 %v1767, %v1767
    %v1832 = vmul.f32 %v1768, %v1768
    %v1833 = vmul.f32 %v1769, %v1769
    %v1834 = vmul.f32 %v1770, %v1770
    %v1835 = vmul.f32 %v1771, %v1771
    %v1836 = vmul.f32 %v1772, %v1772
    %v1837 = vmul.f32 %v1773, %v1773
    %v1838 = vmul.f32 %v1774, %v1774
    %v1839 = vmul.f32 %v1775, %v1775
    %v1840 = vmul.f32 %v1776, %v1776
    %v1841 = vmul.f32 %v1777, %v1777
    %v1842 = vmul.f32 %v1778, %v1778
    %v1843 = vmul.f32 %v1779, %v1779
    %v1844 = vmul.f32 %v1780, %v1780
    %v1845 = vmul.f32 %v1781, %v1781
    %v1846 = vmul.f32 %v1782, %v1782
    %v1847 = vadd.f32 %v1783, %v1785
    %v1848 = vadd.f32 %v1847, %v1787
    %v1849 = vadd.f32 %v1848, %v1789
    %v1850 = vadd.f32 %v1849, %v1791
    %v1851 = vadd.f32 %v1850, %v1793
    %v1852 = vadd.f32 %v1851, %v1795
    %v1853 = vadd.f32 %v1852, %v1797
    %v1854 = vadd.f32 %v1853, %v1799
    %v1855 = vadd.f32 %v1854, %v1801
    %v1856 = vadd.f32 %v1855, %v1803
    %v1857 = vadd.f32 %v1856, %v1805
    %v1858 = vadd.f32 %v1857, %v1807
    %v1859 = vadd.f32 %v1858, %v1809
    %v1860 = vadd.f32 %v1859, %v1811
    %v1861 = vadd.f32 %v1860, %v1813
    %v1862 = vadd.f32 %v1861, %v1815
    %v1863 = vadd.f32 %v1862, %v1817
    %v1864 = vadd.f32 %v1863, %v1819
    %v1865 = vadd.f32 %v1864, %v1821
    %v1866 = vadd.f32 %v1865, %v1823
    %v1867 = vadd.f32 %v1866, %v1825
    %v1868 = vadd.f32 %v1867, %v1827
    %v1869 = vadd.f32 %v1868, %v1829
    %v1870 = vadd.f32 %v1869, %v1831
    %v1871 = vadd.f32 %v1870, %v1833
    %v1872 = vadd.f32 %v1871, %v1835
    %v1873 = vadd.f32 %v1872, %v1837
    %v1874 = vadd.f32 %v1873, %v1839
    %v1875 = vadd.f32 %v1874, %v1841
    %v1876 = vadd.f32 %v1875, %v1843
    %v1877 = vadd.f32 %v1876, %v1845
    %v1878 = vrot.slane %v1877, 4
    %v1879 = vadd.f32 %v1877, %v1878
    %v1880 = vrot.slane %v1879, 2
    %v1881 = vadd.f32 %v1879, %v1880
    %v1882 = vrot.slane %v1881, 1
    %v1883 = vadd.f32 %v1881, %v1882
    %v1884 = vadd.f32 %v1784, %v1786
    %v1885 = vadd.f32 %v1884, %v1788
    %v1886 = vadd.f32 %v1885, %v1790
    %v1887 = vadd.f32 %v1886, %v1792
    %v1888 = vadd.f32 %v1887, %v1794
    %v1889 = vadd.f32 %v1888, %v1796
    %v1890 = vadd.f32 %v1889, %v1798
    %v1891 = vadd.f32 %v1890, %v1800
    %v1892 = vadd.f32 %v1891, %v1802
    %v1893 = vadd.f32 %v1892, %v1804
    %v1894 = vadd.f32 %v1893, %v1806
    %v1895 = vadd.f32 %v1894, %v1808
    %v1896 = vadd.f32 %v1895, %v1810
    %v1897 = vadd.f32 %v1896, %v1812
    %v1898 = vadd.f32 %v1897, %v1814
    %v1899 = vadd.f32 %v1898, %v1816
    %v1900 = vadd.f32 %v1899, %v1818
    %v1901 = vadd.f32 %v1900, %v1820
    %v1902 = vadd.f32 %v1901, %v1822
    %v1903 = vadd.f32 %v1902, %v1824
    %v1904 = vadd.f32 %v1903, %v1826
    %v1905 = vadd.f32 %v1904, %v1828
    %v1906 = vadd.f32 %v1905, %v1830
    %v1907 = vadd.f32 %v1906, %v1832
    %v1908 = vadd.f32 %v1907, %v1834
    %v1909 = vadd.f32 %v1908, %v1836
    %v1910 = vadd.f32 %v1909, %v1838
    %v1911 = vadd.f32 %v1910, %v1840
    %v1912 = vadd.f32 %v1911, %v1842
    %v1913 = vadd.f32 %v1912, %v1844
    %v1914 = vadd.f32 %v1913, %v1846
    %v1915 = vrot.slane %v1914, 4
    %v1916 = vadd.f32 %v1914, %v1915
    %v1917 = vrot.slane %v1916, 2
    %v1918 = vadd.f32 %v1916, %v1917
    %v1919 = vrot.slane %v1918, 1
    %v1920 = vadd.f32 %v1918, %v1919
    %v1921 = vmul.f32 %v1883, %v501
    %v1922 = vmul.f32 %v1920, %v501
    %v1923 = vld [vmem:[%s8] sm:$0x3]
    %v1924 = vadd.f32 %v1921, 1e-05
    %v1925 = vadd.f32 %v1922, 1e-05
    %v1926 = vrsqrt.pop %v1924
    %v1927 = vrsqrt.pop %v1925
    %v1928 = vmul.f32 %v1719, %v1926
    %v1929 = vmul.f32 %v1720, %v1927
    %v1930 = vmul.f32 %v1721, %v1926
    %v1931 = vmul.f32 %v1722, %v1927
    %v1932 = vmul.f32 %v1723, %v1926
    %v1933 = vmul.f32 %v1724, %v1927
    %v1934 = vmul.f32 %v1725, %v1926
    %v1935 = vmul.f32 %v1726, %v1927
    %v1936 = vmul.f32 %v1727, %v1926
    %v1937 = vmul.f32 %v1728, %v1927
    %v1938 = vmul.f32 %v1729, %v1926
    %v1939 = vmul.f32 %v1730, %v1927
    %v1940 = vmul.f32 %v1731, %v1926
    %v1941 = vmul.f32 %v1732, %v1927
    %v1942 = vmul.f32 %v1733, %v1926
    %v1943 = vmul.f32 %v1734, %v1927
    %v1944 = vmul.f32 %v1735, %v1926
    %v1945 = vmul.f32 %v1736, %v1927
    %v1946 = vmul.f32 %v1737, %v1926
    %v1947 = vmul.f32 %v1738, %v1927
    %v1948 = vmul.f32 %v1739, %v1926
    %v1949 = vmul.f32 %v1740, %v1927
    %v1950 = vmul.f32 %v1741, %v1926
    %v1951 = vmul.f32 %v1742, %v1927
    %v1952 = vmul.f32 %v1743, %v1926
    %v1953 = vmul.f32 %v1744, %v1927
    %v1954 = vmul.f32 %v1745, %v1926
    %v1955 = vmul.f32 %v1746, %v1927
    %v1956 = vmul.f32 %v1747, %v1926
    %v1957 = vmul.f32 %v1748, %v1927
    %v1958 = vmul.f32 %v1749, %v1926
    %v1959 = vmul.f32 %v1750, %v1927
    %v1960 = vmul.f32 %v1751, %v1926
    %v1961 = vmul.f32 %v1752, %v1927
    %v1962 = vmul.f32 %v1753, %v1926
    %v1963 = vmul.f32 %v1754, %v1927
    %v1964 = vmul.f32 %v1755, %v1926
    %v1965 = vmul.f32 %v1756, %v1927
    %v1966 = vmul.f32 %v1757, %v1926
    %v1967 = vmul.f32 %v1758, %v1927
    %v1968 = vmul.f32 %v1759, %v1926
    %v1969 = vmul.f32 %v1760, %v1927
    %v1970 = vmul.f32 %v1761, %v1926
    %v1971 = vmul.f32 %v1762, %v1927
    %v1972 = vmul.f32 %v1763, %v1926
    %v1973 = vmul.f32 %v1764, %v1927
    %v1974 = vmul.f32 %v1765, %v1926
    %v1975 = vmul.f32 %v1766, %v1927
    %v1976 = vmul.f32 %v1767, %v1926
    %v1977 = vmul.f32 %v1768, %v1927
    %v1978 = vmul.f32 %v1769, %v1926
    %v1979 = vmul.f32 %v1770, %v1927
    %v1980 = vmul.f32 %v1771, %v1926
    %v1981 = vmul.f32 %v1772, %v1927
    %v1982 = vmul.f32 %v1773, %v1926
    %v1983 = vmul.f32 %v1774, %v1927
    %v1984 = vmul.f32 %v1775, %v1926
    %v1985 = vmul.f32 %v1776, %v1927
    %v1986 = vmul.f32 %v1777, %v1926
    %v1987 = vmul.f32 %v1778, %v1927
    %v1988 = vmul.f32 %v1779, %v1926
    %v1989 = vmul.f32 %v1780, %v1927
    %v1990 = vmul.f32 %v1781, %v1926
    %v1991 = vmul.f32 %v1782, %v1927
    %v1993 = vlaneseq
    %v1994 = vshrl.u32 %v1993, 7
    %v1995 = vsub.s32 0, %v1994
    %v1996 = vrot.slane %v1923, %v1995
    %v1997 = vlaneseq
    %v1998 = vshrl.u32 %v1997, 7
    %v1999 = vsub.s32 1, %v1998
    %v2000 = vrot.slane %v1923, %v1999
    %v2003 = vmul.f32 %v1996, %v1928
    %v2004 = vmul.f32 %v2000, %v1929
    %v2005 = vmul.f32 %v1996, %v1930
    %v2006 = vmul.f32 %v2000, %v1931
    %v2007 = vmul.f32 %v1996, %v1932
    %v2008 = vmul.f32 %v2000, %v1933
    %v2009 = vmul.f32 %v1996, %v1934
    %v2010 = vmul.f32 %v2000, %v1935
    %v2011 = vmul.f32 %v1996, %v1936
    %v2012 = vmul.f32 %v2000, %v1937
    %v2013 = vmul.f32 %v1996, %v1938
    %v2014 = vmul.f32 %v2000, %v1939
    %v2015 = vmul.f32 %v1996, %v1940
    %v2016 = vmul.f32 %v2000, %v1941
    %v2017 = vmul.f32 %v1996, %v1942
    %v2018 = vmul.f32 %v2000, %v1943
    %v2019 = vmul.f32 %v1996, %v1944
    %v2020 = vmul.f32 %v2000, %v1945
    %v2021 = vmul.f32 %v1996, %v1946
    %v2022 = vmul.f32 %v2000, %v1947
    %v2023 = vmul.f32 %v1996, %v1948
    %v2024 = vmul.f32 %v2000, %v1949
    %v2025 = vmul.f32 %v1996, %v1950
    %v2026 = vmul.f32 %v2000, %v1951
    %v2027 = vmul.f32 %v1996, %v1952
    %v2028 = vmul.f32 %v2000, %v1953
    %v2029 = vmul.f32 %v1996, %v1954
    %v2030 = vmul.f32 %v2000, %v1955
    %v2031 = vmul.f32 %v1996, %v1956
    %v2032 = vmul.f32 %v2000, %v1957
    %v2033 = vmul.f32 %v1996, %v1958
    %v2034 = vmul.f32 %v2000, %v1959
    %v2035 = vmul.f32 %v1996, %v1960
    %v2036 = vmul.f32 %v2000, %v1961
    %v2037 = vmul.f32 %v1996, %v1962
    %v2038 = vmul.f32 %v2000, %v1963
    %v2039 = vmul.f32 %v1996, %v1964
    %v2040 = vmul.f32 %v2000, %v1965
    %v2041 = vmul.f32 %v1996, %v1966
    %v2042 = vmul.f32 %v2000, %v1967
    %v2043 = vmul.f32 %v1996, %v1968
    %v2044 = vmul.f32 %v2000, %v1969
    %v2045 = vmul.f32 %v1996, %v1970
    %v2046 = vmul.f32 %v2000, %v1971
    %v2047 = vmul.f32 %v1996, %v1972
    %v2048 = vmul.f32 %v2000, %v1973
    %v2049 = vmul.f32 %v1996, %v1974
    %v2050 = vmul.f32 %v2000, %v1975
    %v2051 = vmul.f32 %v1996, %v1976
    %v2052 = vmul.f32 %v2000, %v1977
    %v2053 = vmul.f32 %v1996, %v1978
    %v2054 = vmul.f32 %v2000, %v1979
    %v2055 = vmul.f32 %v1996, %v1980
    %v2056 = vmul.f32 %v2000, %v1981
    %v2057 = vmul.f32 %v1996, %v1982
    %v2058 = vmul.f32 %v2000, %v1983
    %v2059 = vmul.f32 %v1996, %v1984
    %v2060 = vmul.f32 %v2000, %v1985
    %v2061 = vmul.f32 %v1996, %v1986
    %v2062 = vmul.f32 %v2000, %v1987
    %v2063 = vmul.f32 %v1996, %v1988
    %v2064 = vmul.f32 %v2000, %v1989
    %v2065 = vmul.f32 %v1996, %v1990
    %v2066 = vmul.f32 %v2000, %v1991
    %v2067 = vld [vmem:[%s9] sm:$0x3]
    %v2069 = vlaneseq
    %v2070 = vshrl.u32 %v2069, 7
    %v2071 = vsub.s32 0, %v2070
    %v2072 = vrot.slane %v2067, %v2071
    %v2073 = vlaneseq
    %v2074 = vshrl.u32 %v2073, 7
    %v2075 = vsub.s32 1, %v2074
    %v2076 = vrot.slane %v2067, %v2075
    %v2079 = vadd.f32 %v2003, %v2072
    %v2080 = vadd.f32 %v2004, %v2076
    %v2081 = vadd.f32 %v2005, %v2072
    %v2082 = vadd.f32 %v2006, %v2076
    %v2083 = vadd.f32 %v2007, %v2072
    %v2084 = vadd.f32 %v2008, %v2076
    %v2085 = vadd.f32 %v2009, %v2072
    %v2086 = vadd.f32 %v2010, %v2076
    %v2087 = vadd.f32 %v2011, %v2072
    %v2088 = vadd.f32 %v2012, %v2076
    %v2089 = vadd.f32 %v2013, %v2072
    %v2090 = vadd.f32 %v2014, %v2076
    %v2091 = vadd.f32 %v2015, %v2072
    %v2092 = vadd.f32 %v2016, %v2076
    %v2093 = vadd.f32 %v2017, %v2072
    %v2094 = vadd.f32 %v2018, %v2076
    %v2095 = vadd.f32 %v2019, %v2072
    %v2096 = vadd.f32 %v2020, %v2076
    %v2097 = vadd.f32 %v2021, %v2072
    %v2098 = vadd.f32 %v2022, %v2076
    %v2099 = vadd.f32 %v2023, %v2072
    %v2100 = vadd.f32 %v2024, %v2076
    %v2101 = vadd.f32 %v2025, %v2072
    %v2102 = vadd.f32 %v2026, %v2076
    %v2103 = vadd.f32 %v2027, %v2072
    %v2104 = vadd.f32 %v2028, %v2076
    %v2105 = vadd.f32 %v2029, %v2072
    %v2106 = vadd.f32 %v2030, %v2076
    %v2107 = vadd.f32 %v2031, %v2072
    %v2108 = vadd.f32 %v2032, %v2076
    %v2109 = vadd.f32 %v2033, %v2072
    %v2110 = vadd.f32 %v2034, %v2076
    %v2111 = vadd.f32 %v2035, %v2072
    %v2112 = vadd.f32 %v2036, %v2076
    %v2113 = vadd.f32 %v2037, %v2072
    %v2114 = vadd.f32 %v2038, %v2076
    %v2115 = vadd.f32 %v2039, %v2072
    %v2116 = vadd.f32 %v2040, %v2076
    %v2117 = vadd.f32 %v2041, %v2072
    %v2118 = vadd.f32 %v2042, %v2076
    %v2119 = vadd.f32 %v2043, %v2072
    %v2120 = vadd.f32 %v2044, %v2076
    %v2121 = vadd.f32 %v2045, %v2072
    %v2122 = vadd.f32 %v2046, %v2076
    %v2123 = vadd.f32 %v2047, %v2072
    %v2124 = vadd.f32 %v2048, %v2076
    %v2125 = vadd.f32 %v2049, %v2072
    %v2126 = vadd.f32 %v2050, %v2076
    %v2127 = vadd.f32 %v2051, %v2072
    %v2128 = vadd.f32 %v2052, %v2076
    %v2129 = vadd.f32 %v2053, %v2072
    %v2130 = vadd.f32 %v2054, %v2076
    %v2131 = vadd.f32 %v2055, %v2072
    %v2132 = vadd.f32 %v2056, %v2076
    %v2133 = vadd.f32 %v2057, %v2072
    %v2134 = vadd.f32 %v2058, %v2076
    %v2135 = vadd.f32 %v2059, %v2072
    %v2136 = vadd.f32 %v2060, %v2076
    %v2137 = vadd.f32 %v2061, %v2072
    %v2138 = vadd.f32 %v2062, %v2076
    %v2139 = vadd.f32 %v2063, %v2072
    %v2140 = vadd.f32 %v2064, %v2076
    %v2141 = vadd.f32 %v2065, %v2072
    %v2142 = vadd.f32 %v2066, %v2076
    %v2143 = vmul.f32 %v2079, 0.2
    %v2144 = vmul.f32 %v2080, 0.2
    %v2145 = vmul.f32 %v2081, 0.2
    %v2146 = vmul.f32 %v2082, 0.2
    %v2147 = vmul.f32 %v2083, 0.2
    %v2148 = vmul.f32 %v2084, 0.2
    %v2149 = vmul.f32 %v2085, 0.2
    %v2150 = vmul.f32 %v2086, 0.2
    %v2151 = vmul.f32 %v2087, 0.2
    %v2152 = vmul.f32 %v2088, 0.2
    %v2153 = vmul.f32 %v2089, 0.2
    %v2154 = vmul.f32 %v2090, 0.2
    %v2155 = vmul.f32 %v2091, 0.2
    %v2156 = vmul.f32 %v2092, 0.2
    %v2157 = vmul.f32 %v2093, 0.2
    %v2158 = vmul.f32 %v2094, 0.2
    %v2159 = vmul.f32 %v2095, 0.2
    %v2160 = vmul.f32 %v2096, 0.2
    %v2161 = vmul.f32 %v2097, 0.2
    %v2162 = vmul.f32 %v2098, 0.2
    %v2163 = vmul.f32 %v2099, 0.2
    %v2164 = vmul.f32 %v2100, 0.2
    %v2165 = vmul.f32 %v2101, 0.2
    %v2166 = vmul.f32 %v2102, 0.2
    %v2167 = vmul.f32 %v2103, 0.2
    %v2168 = vmul.f32 %v2104, 0.2
    %v2169 = vmul.f32 %v2105, 0.2
    %v2170 = vmul.f32 %v2106, 0.2
    %v2171 = vmul.f32 %v2107, 0.2
    %v2172 = vmul.f32 %v2108, 0.2
    %v2173 = vmul.f32 %v2109, 0.2
    %v2174 = vmul.f32 %v2110, 0.2
    %v2175 = vmul.f32 %v2111, 0.2
    %v2176 = vmul.f32 %v2112, 0.2
    %v2177 = vmul.f32 %v2113, 0.2
    %v2178 = vmul.f32 %v2114, 0.2
    %v2179 = vmul.f32 %v2115, 0.2
    %v2180 = vmul.f32 %v2116, 0.2
    %v2181 = vmul.f32 %v2117, 0.2
    %v2182 = vmul.f32 %v2118, 0.2
    %v2183 = vmul.f32 %v2119, 0.2
    %v2184 = vmul.f32 %v2120, 0.2
    %v2185 = vmul.f32 %v2121, 0.2
    %v2186 = vmul.f32 %v2122, 0.2
    %v2187 = vmul.f32 %v2123, 0.2
    %v2188 = vmul.f32 %v2124, 0.2
    %v2189 = vmul.f32 %v2125, 0.2
    %v2190 = vmul.f32 %v2126, 0.2
    %v2191 = vmul.f32 %v2127, 0.2
    %v2192 = vmul.f32 %v2128, 0.2
    %v2193 = vmul.f32 %v2129, 0.2
    %v2194 = vmul.f32 %v2130, 0.2
    %v2195 = vmul.f32 %v2131, 0.2
    %v2196 = vmul.f32 %v2132, 0.2
    %v2197 = vmul.f32 %v2133, 0.2
    %v2198 = vmul.f32 %v2134, 0.2
    %v2199 = vmul.f32 %v2135, 0.2
    %v2200 = vmul.f32 %v2136, 0.2
    %v2201 = vmul.f32 %v2137, 0.2
    %v2202 = vmul.f32 %v2138, 0.2
    %v2203 = vmul.f32 %v2139, 0.2
    %v2204 = vmul.f32 %v2140, 0.2
    %v2205 = vmul.f32 %v2141, 0.2
    %v2206 = vmul.f32 %v2142, 0.2
    %v2207 = vmax.f32 %v2079, %v2143
    %v2208 = vmax.f32 %v2080, %v2144
    %v2209 = vmax.f32 %v2081, %v2145
    %v2210 = vmax.f32 %v2082, %v2146
    %v2211 = vmax.f32 %v2083, %v2147
    %v2212 = vmax.f32 %v2084, %v2148
    %v2213 = vmax.f32 %v2085, %v2149
    %v2214 = vmax.f32 %v2086, %v2150
    %v2215 = vmax.f32 %v2087, %v2151
    %v2216 = vmax.f32 %v2088, %v2152
    %v2217 = vmax.f32 %v2089, %v2153
    %v2218 = vmax.f32 %v2090, %v2154
    %v2219 = vmax.f32 %v2091, %v2155
    %v2220 = vmax.f32 %v2092, %v2156
    %v2221 = vmax.f32 %v2093, %v2157
    %v2222 = vmax.f32 %v2094, %v2158
    %v2223 = vmax.f32 %v2095, %v2159
    %v2224 = vmax.f32 %v2096, %v2160
    %v2225 = vmax.f32 %v2097, %v2161
    %v2226 = vmax.f32 %v2098, %v2162
    %v2227 = vmax.f32 %v2099, %v2163
    %v2228 = vmax.f32 %v2100, %v2164
    %v2229 = vmax.f32 %v2101, %v2165
    %v2230 = vmax.f32 %v2102, %v2166
    %v2231 = vmax.f32 %v2103, %v2167
    %v2232 = vmax.f32 %v2104, %v2168
    %v2233 = vmax.f32 %v2105, %v2169
    %v2234 = vmax.f32 %v2106, %v2170
    %v2235 = vmax.f32 %v2107, %v2171
    %v2236 = vmax.f32 %v2108, %v2172
    %v2237 = vmax.f32 %v2109, %v2173
    %v2238 = vmax.f32 %v2110, %v2174
    %v2239 = vmax.f32 %v2111, %v2175
    %v2240 = vmax.f32 %v2112, %v2176
    %v2241 = vmax.f32 %v2113, %v2177
    %v2242 = vmax.f32 %v2114, %v2178
    %v2243 = vmax.f32 %v2115, %v2179
    %v2244 = vmax.f32 %v2116, %v2180
    %v2245 = vmax.f32 %v2117, %v2181
    %v2246 = vmax.f32 %v2118, %v2182
    %v2247 = vmax.f32 %v2119, %v2183
    %v2248 = vmax.f32 %v2120, %v2184
    %v2249 = vmax.f32 %v2121, %v2185
    %v2250 = vmax.f32 %v2122, %v2186
    %v2251 = vmax.f32 %v2123, %v2187
    %v2252 = vmax.f32 %v2124, %v2188
    %v2253 = vmax.f32 %v2125, %v2189
    %v2254 = vmax.f32 %v2126, %v2190
    %v2255 = vmax.f32 %v2127, %v2191
    %v2256 = vmax.f32 %v2128, %v2192
    %v2257 = vmax.f32 %v2129, %v2193
    %v2258 = vmax.f32 %v2130, %v2194
    %v2259 = vmax.f32 %v2131, %v2195
    %v2260 = vmax.f32 %v2132, %v2196
    %v2261 = vmax.f32 %v2133, %v2197
    %v2262 = vmax.f32 %v2134, %v2198
    %v2263 = vmax.f32 %v2135, %v2199
    %v2264 = vmax.f32 %v2136, %v2200
    %v2265 = vmax.f32 %v2137, %v2201
    %v2266 = vmax.f32 %v2138, %v2202
    %v2267 = vmax.f32 %v2139, %v2203
    %v2268 = vmax.f32 %v2140, %v2204
    %v2269 = vmax.f32 %v2141, %v2205
    %v2270 = vmax.f32 %v2142, %v2206
    %v2271 = vpack.c.bf16 %v2209, %v2207
    %v2272 = vpack.c.bf16 %v2210, %v2208
    %v2273 = vpack.c.bf16 %v2213, %v2211
    %v2274 = vpack.c.bf16 %v2214, %v2212
    %v2275 = vpack.c.bf16 %v2217, %v2215
    %v2276 = vpack.c.bf16 %v2218, %v2216
    %v2277 = vpack.c.bf16 %v2221, %v2219
    %v2278 = vpack.c.bf16 %v2222, %v2220
    %v2279 = vpack.c.bf16 %v2225, %v2223
    %v2280 = vpack.c.bf16 %v2226, %v2224
    %v2281 = vpack.c.bf16 %v2229, %v2227
    %v2282 = vpack.c.bf16 %v2230, %v2228
    %v2283 = vpack.c.bf16 %v2233, %v2231
    %v2284 = vpack.c.bf16 %v2234, %v2232
    %v2285 = vpack.c.bf16 %v2237, %v2235
    %v2286 = vpack.c.bf16 %v2238, %v2236
    %v2287 = vpack.c.bf16 %v2241, %v2239
    %v2288 = vpack.c.bf16 %v2242, %v2240
    %v2289 = vpack.c.bf16 %v2245, %v2243
    %v2290 = vpack.c.bf16 %v2246, %v2244
    %v2291 = vpack.c.bf16 %v2249, %v2247
    %v2292 = vpack.c.bf16 %v2250, %v2248
    %v2293 = vpack.c.bf16 %v2253, %v2251
    %v2294 = vpack.c.bf16 %v2254, %v2252
    %v2295 = vpack.c.bf16 %v2257, %v2255
    %v2296 = vpack.c.bf16 %v2258, %v2256
    %v2297 = vpack.c.bf16 %v2261, %v2259
    %v2298 = vpack.c.bf16 %v2262, %v2260
    %v2299 = vpack.c.bf16 %v2265, %v2263
    %v2300 = vpack.c.bf16 %v2266, %v2264
    %v2301 = vpack.c.bf16 %v2269, %v2267
    %v2302 = vpack.c.bf16 %v2270, %v2268
    %v2303 = vld [vmem:[#allocation10] sm:$0xff]
    %v2304 = vld [vmem:[#allocation10 + $0x8] sm:$0xff]
    %v2305 = vld [vmem:[#allocation10 + $0x10] sm:$0xff]
    %v2306 = vld [vmem:[#allocation10 + $0x18] sm:$0xff]
    %v2307 = vld [vmem:[#allocation10 + $0x20] sm:$0xff]
    %v2308 = vld [vmem:[#allocation10 + $0x28] sm:$0xff]
    %v2309 = vld [vmem:[#allocation10 + $0x30] sm:$0xff]
    %v2310 = vld [vmem:[#allocation10 + $0x38] sm:$0xff]
    %v2311 = vld [vmem:[#allocation10 + $0x40] sm:$0xff]
    %v2312 = vld [vmem:[#allocation10 + $0x48] sm:$0xff]
    %v2313 = vld [vmem:[#allocation10 + $0x50] sm:$0xff]
    %v2314 = vld [vmem:[#allocation10 + $0x58] sm:$0xff]
    %v2315 = vld [vmem:[#allocation10 + $0x60] sm:$0xff]
    %v2316 = vld [vmem:[#allocation10 + $0x68] sm:$0xff]
    %v2317 = vld [vmem:[#allocation10 + $0x70] sm:$0xff]
    %v2318 = vld [vmem:[#allocation10 + $0x78] sm:$0xff]
    %v2319 = vld [vmem:[#allocation10 + $0x80] sm:$0xff]
    %v2320 = vld [vmem:[#allocation10 + $0x88] sm:$0xff]
    %v2321 = vld [vmem:[#allocation10 + $0x90] sm:$0xff]
    %v2322 = vld [vmem:[#allocation10 + $0x98] sm:$0xff]
    %v2323 = vld [vmem:[#allocation10 + $0xa0] sm:$0xff]
    %v2324 = vld [vmem:[#allocation10 + $0xa8] sm:$0xff]
    %v2325 = vld [vmem:[#allocation10 + $0xb0] sm:$0xff]
    %v2326 = vld [vmem:[#allocation10 + $0xb8] sm:$0xff]
    %v2327 = vld [vmem:[#allocation10 + $0xc0] sm:$0xff]
    %v2328 = vld [vmem:[#allocation10 + $0xc8] sm:$0xff]
    %v2329 = vld [vmem:[#allocation10 + $0xd0] sm:$0xff]
    %v2330 = vld [vmem:[#allocation10 + $0xd8] sm:$0xff]
    %v2331 = vld [vmem:[#allocation10 + $0xe0] sm:$0xff]
    %v2332 = vld [vmem:[#allocation10 + $0xe8] sm:$0xff]
    %v2333 = vld [vmem:[#allocation10 + $0xf0] sm:$0xff]
    %v2334 = vld [vmem:[#allocation10 + $0xf8] sm:$0xff]
    %v2335 = vld [vmem:[%s11] sm:$0x3]
    %v2337 = vlaneseq
    %v2338 = vshrl.u32 %v2337, 7
    %v2339 = vsub.s32 0, %v2338
    %v2340 = vrot.slane %v2335, %v2339
    %v2341 = vlaneseq
    %v2342 = vshrl.u32 %v2341, 7
    %v2343 = vsub.s32 1, %v2342
    %v2344 = vrot.slane %v2335, %v2343
    %v2379 = vunpack.c.l.b16 %v2303
    %v2380 = vunpack.c.h.b16 %v2303
    %v2381 = vunpack.c.l.b16 %v2304
    %v2382 = vunpack.c.h.b16 %v2304
    %v2383 = vunpack.c.l.b16 %v2305
    %v2384 = vunpack.c.h.b16 %v2305
    %v2385 = vunpack.c.l.b16 %v2306
    %v2386 = vunpack.c.h.b16 %v2306
    %v2387 = vunpack.c.l.b16 %v2307
    %v2388 = vunpack.c.h.b16 %v2307
    %v2389 = vunpack.c.l.b16 %v2308
    %v2390 = vunpack.c.h.b16 %v2308
    %v2391 = vunpack.c.l.b16 %v2309
    %v2392 = vunpack.c.h.b16 %v2309
    %v2393 = vunpack.c.l.b16 %v2310
    %v2394 = vunpack.c.h.b16 %v2310
    %v2395 = vunpack.c.l.b16 %v2311
    %v2396 = vunpack.c.h.b16 %v2311
    %v2397 = vunpack.c.l.b16 %v2312
    %v2398 = vunpack.c.h.b16 %v2312
    %v2399 = vunpack.c.l.b16 %v2313
    %v2400 = vunpack.c.h.b16 %v2313
    %v2401 = vunpack.c.l.b16 %v2314
    %v2402 = vunpack.c.h.b16 %v2314
    %v2403 = vunpack.c.l.b16 %v2315
    %v2404 = vunpack.c.h.b16 %v2315
    %v2405 = vunpack.c.l.b16 %v2316
    %v2406 = vunpack.c.h.b16 %v2316
    %v2407 = vunpack.c.l.b16 %v2317
    %v2408 = vunpack.c.h.b16 %v2317
    %v2409 = vunpack.c.l.b16 %v2318
    %v2410 = vunpack.c.h.b16 %v2318
    %v2411 = vunpack.c.l.b16 %v2319
    %v2412 = vunpack.c.h.b16 %v2319
    %v2413 = vunpack.c.l.b16 %v2320
    %v2414 = vunpack.c.h.b16 %v2320
    %v2415 = vunpack.c.l.b16 %v2321
    %v2416 = vunpack.c.h.b16 %v2321
    %v2417 = vunpack.c.l.b16 %v2322
    %v2418 = vunpack.c.h.b16 %v2322
    %v2419 = vunpack.c.l.b16 %v2323
    %v2420 = vunpack.c.h.b16 %v2323
    %v2421 = vunpack.c.l.b16 %v2324
    %v2422 = vunpack.c.h.b16 %v2324
    %v2423 = vunpack.c.l.b16 %v2325
    %v2424 = vunpack.c.h.b16 %v2325
    %v2425 = vunpack.c.l.b16 %v2326
    %v2426 = vunpack.c.h.b16 %v2326
    %v2427 = vunpack.c.l.b16 %v2327
    %v2428 = vunpack.c.h.b16 %v2327
    %v2429 = vunpack.c.l.b16 %v2328
    %v2430 = vunpack.c.h.b16 %v2328
    %v2431 = vunpack.c.l.b16 %v2329
    %v2432 = vunpack.c.h.b16 %v2329
    %v2433 = vunpack.c.l.b16 %v2330
    %v2434 = vunpack.c.h.b16 %v2330
    %v2435 = vunpack.c.l.b16 %v2331
    %v2436 = vunpack.c.h.b16 %v2331
    %v2437 = vunpack.c.l.b16 %v2332
    %v2438 = vunpack.c.h.b16 %v2332
    %v2439 = vunpack.c.l.b16 %v2333
    %v2440 = vunpack.c.h.b16 %v2333
    %v2441 = vunpack.c.l.b16 %v2334
    %v2442 = vunpack.c.h.b16 %v2334
    %v2443 = vpack.c.b16 %v2381, %v2379
    %v2444 = vpack.c.b16 %v2382, %v2380
    %v2445 = vpack.c.b16 %v2385, %v2383
    %v2446 = vpack.c.b16 %v2386, %v2384
    %v2447 = vpack.c.b16 %v2389, %v2387
    %v2448 = vpack.c.b16 %v2390, %v2388
    %v2449 = vpack.c.b16 %v2393, %v2391
    %v2450 = vpack.c.b16 %v2394, %v2392
    %v2451 = vpack.c.b16 %v2397, %v2395
    %v2452 = vpack.c.b16 %v2398, %v2396
    %v2453 = vpack.c.b16 %v2401, %v2399
    %v2454 = vpack.c.b16 %v2402, %v2400
    %v2455 = vpack.c.b16 %v2405, %v2403
    %v2456 = vpack.c.b16 %v2406, %v2404
    %v2457 = vpack.c.b16 %v2409, %v2407
    %v2458 = vpack.c.b16 %v2410, %v2408
    %v2459 = vpack.c.b16 %v2413, %v2411
    %v2460 = vpack.c.b16 %v2414, %v2412
    %v2461 = vpack.c.b16 %v2417, %v2415
    %v2462 = vpack.c.b16 %v2418, %v2416
    %v2463 = vpack.c.b16 %v2421, %v2419
    %v2464 = vpack.c.b16 %v2422, %v2420
    %v2465 = vpack.c.b16 %v2425, %v2423
    %v2466 = vpack.c.b16 %v2426, %v2424
    %v2467 = vpack.c.b16 %v2429, %v2427
    %v2468 = vpack.c.b16 %v2430, %v2428
    %v2469 = vpack.c.b16 %v2433, %v2431
    %v2470 = vpack.c.b16 %v2434, %v2432
    %v2471 = vpack.c.b16 %v2437, %v2435
    %v2472 = vpack.c.b16 %v2438, %v2436
    %v2473 = vpack.c.b16 %v2441, %v2439
    %v2474 = vpack.c.b16 %v2442, %v2440
    %2507 = vmatprep.subr.bf16.mxu0 %v2444
    %2508 = vmatpush1.bf16.msra.mxu0 %v2443
    %2509 = vmatprep.subr.bf16.mxu0 %v2446
    %2510 = vmatpush1.bf16.msra.mxu0 %v2445
    %2511 = vmatprep.subr.bf16.mxu0 %v2448
    %2512 = vmatpush1.bf16.msra.mxu0 %v2447
    %2513 = vmatprep.subr.bf16.mxu0 %v2450
    %2514 = vmatpush1.bf16.msra.mxu0 %v2449
    %2515 = vmatprep.subr.bf16.mxu0 %v2452
    %2516 = vmatpush1.bf16.msra.mxu0 %v2451
    %2517 = vmatprep.subr.bf16.mxu0 %v2454
    %2518 = vmatpush1.bf16.msra.mxu0 %v2453
    %2519 = vmatprep.subr.bf16.mxu0 %v2456
    %2520 = vmatpush1.bf16.msra.mxu0 %v2455
    %2521 = vmatprep.subr.bf16.mxu0 %v2458
    %2522 = vmatpush1.bf16.msra.mxu0 %v2457
    %2523 = vmatprep.subr.bf16.mxu0 %v2460
    %2524 = vmatpush1.bf16.msra.mxu0 %v2459
    %2525 = vmatprep.subr.bf16.mxu0 %v2462
    %2526 = vmatpush1.bf16.msra.mxu0 %v2461
    %2527 = vmatprep.subr.bf16.mxu0 %v2464
    %2528 = vmatpush1.bf16.msra.mxu0 %v2463
    %2529 = vmatprep.subr.bf16.mxu0 %v2466
    %2530 = vmatpush1.bf16.msra.mxu0 %v2465
    %2531 = vmatprep.subr.bf16.mxu0 %v2468
    %2532 = vmatpush1.bf16.msra.mxu0 %v2467
    %2533 = vmatprep.subr.bf16.mxu0 %v2470
    %2534 = vmatpush1.bf16.msra.mxu0 %v2469
    %2535 = vmatprep.subr.bf16.mxu0 %v2472
    %2536 = vmatpush1.bf16.msra.mxu0 %v2471
    %2537 = vmatprep.subr.bf16.mxu0 %v2474
    %2538 = vmatpush1.bf16.msra.mxu0 %v2473
    %2539 = vmatprep.mubr.bf16.mxu0 %v2272
    %2540 = vmatmul.mubr.bf16.gmra.mrb[0].mxu0 %v2271
    %v2541 = vpop.f32.mrb[0].mxu0
    %v2542 = vadd.f32 %v2340, %v2541
    %v2543 = vpop.f32.mrb[0].mxu0
    %v2544 = vadd.f32 %v2344, %v2543
    %v2545 = vpop.f32.mrb[0].mxu0
    %v2546 = vadd.f32 %v2340, %v2545
    %v2547 = vpop.f32.mrb[0].mxu0
    %v2548 = vadd.f32 %v2344, %v2547
    %2549 = vmatprep.mubr.bf16.mxu0 %v2274
    %2550 = vmatmul.mubr.bf16.gmra.mrb[0].mxu0 %v2273
    %v2551 = vpop.f32.mrb[0].mxu0
    %v2552 = vadd.f32 %v2340, %v2551
    %v2553 = vpop.f32.mrb[0].mxu0
    %v2554 = vadd.f32 %v2344, %v2553
    %v2555 = vpop.f32.mrb[0].mxu0
    %v2556 = vadd.f32 %v2340, %v2555
    %v2557 = vpop.f32.mrb[0].mxu0
    %v2558 = vadd.f32 %v2344, %v2557
    %2559 = vmatprep.mubr.bf16.mxu0 %v2276
    %2560 = vmatmul.mubr.bf16.gmra.mrb[0].mxu0 %v2275
    %v2561 = vpop.f32.mrb[0].mxu0
    %v2562 = vadd.f32 %v2340, %v2561
    %v2563 = vpop.f32.mrb[0].mxu0
    %v2564 = vadd.f32 %v2344, %v2563
    %v2565 = vpop.f32.mrb[0].mxu0
    %v2566 = vadd.f32 %v2340, %v2565
    %v2567 = vpop.f32.mrb[0].mxu0
    %v2568 = vadd.f32 %v2344, %v2567
    %2569 = vmatprep.mubr.bf16.mxu0 %v2278
    %2570 = vmatmul.mubr.bf16.gmra.mrb[0].mxu0 %v2277
    %v2571 = vpop.f32.mrb[0].mxu0
    %v2572 = vadd.f32 %v2340, %v2571
    %v2573 = vpop.f32.mrb[0].mxu0
    %v2574 = vadd.f32 %v2344, %v2573
    %v2575 = vpop.f32.mrb[0].mxu0
    %v2576 = vadd.f32 %v2340, %v2575
    %v2577 = vpop.f32.mrb[0].mxu0
    %v2578 = vadd.f32 %v2344, %v2577
    %2579 = vmatprep.mubr.bf16.mxu0 %v2280
    %2580 = vmatmul.mubr.bf16.gmra.mrb[0].mxu0 %v2279
    %v2581 = vpop.f32.mrb[0].mxu0
    %v2582 = vadd.f32 %v2340, %v2581
    %v2583 = vpop.f32.mrb[0].mxu0
    %v2584 = vadd.f32 %v2344, %v2583
    %v2585 = vpop.f32.mrb[0].mxu0
    %v2586 = vadd.f32 %v2340, %v2585
    %v2587 = vpop.f32.mrb[0].mxu0
    %v2588 = vadd.f32 %v2344, %v2587
    %2589 = vmatprep.mubr.bf16.mxu0 %v2282
    %2590 = vmatmul.mubr.bf16.gmra.mrb[0].mxu0 %v2281
    %v2591 = vpop.f32.mrb[0].mxu0
    %v2592 = vadd.f32 %v2340, %v2591
    %v2593 = vpop.f32.mrb[0].mxu0
    %v2594 = vadd.f32 %v2344, %v2593
    %v2595 = vpop.f32.mrb[0].mxu0
    %v2596 = vadd.f32 %v2340, %v2595
    %v2597 = vpop.f32.mrb[0].mxu0
    %v2598 = vadd.f32 %v2344, %v2597
    %2599 = vmatprep.mubr.bf16.mxu0 %v2284
    %2600 = vmatmul.mubr.bf16.gmra.mrb[0].mxu0 %v2283
    %v2601 = vpop.f32.mrb[0].mxu0
    %v2602 = vadd.f32 %v2340, %v2601
    %v2603 = vpop.f32.mrb[0].mxu0
    %v2604 = vadd.f32 %v2344, %v2603
    %v2605 = vpop.f32.mrb[0].mxu0
    %v2606 = vadd.f32 %v2340, %v2605
    %v2607 = vpop.f32.mrb[0].mxu0
    %v2608 = vadd.f32 %v2344, %v2607
    %2609 = vmatprep.mubr.bf16.mxu0 %v2286
    %2610 = vmatmul.mubr.bf16.gmra.mrb[0].mxu0 %v2285
    %v2611 = vpop.f32.mrb[0].mxu0
    %v2612 = vadd.f32 %v2340, %v2611
    %v2613 = vpop.f32.mrb[0].mxu0
    %v2614 = vadd.f32 %v2344, %v2613
    %v2615 = vpop.f32.mrb[0].mxu0
    %v2616 = vadd.f32 %v2340, %v2615
    %v2617 = vpop.f32.mrb[0].mxu0
    %v2618 = vadd.f32 %v2344, %v2617
    %2619 = vmatprep.mubr.bf16.mxu0 %v2288
    %2620 = vmatmul.mubr.bf16.gmra.mrb[0].mxu0 %v2287
    %v2621 = vpop.f32.mrb[0].mxu0
    %v2622 = vadd.f32 %v2340, %v2621
    %v2623 = vpop.f32.mrb[0].mxu0
    %v2624 = vadd.f32 %v2344, %v2623
    %v2625 = vpop.f32.mrb[0].mxu0
    %v2626 = vadd.f32 %v2340, %v2625
    %v2627 = vpop.f32.mrb[0].mxu0
    %v2628 = vadd.f32 %v2344, %v2627
    %2629 = vmatprep.mubr.bf16.mxu0 %v2290
    %2630 = vmatmul.mubr.bf16.gmra.mrb[0].mxu0 %v2289
    %v2631 = vpop.f32.mrb[0].mxu0
    %v2632 = vadd.f32 %v2340, %v2631
    %v2633 = vpop.f32.mrb[0].mxu0
    %v2634 = vadd.f32 %v2344, %v2633
    %v2635 = vpop.f32.mrb[0].mxu0
    %v2636 = vadd.f32 %v2340, %v2635
    %v2637 = vpop.f32.mrb[0].mxu0
    %v2638 = vadd.f32 %v2344, %v2637
    %2639 = vmatprep.mubr.bf16.mxu0 %v2292
    %2640 = vmatmul.mubr.bf16.gmra.mrb[0].mxu0 %v2291
    %v2641 = vpop.f32.mrb[0].mxu0
    %v2642 = vadd.f32 %v2340, %v2641
    %v2643 = vpop.f32.mrb[0].mxu0
    %v2644 = vadd.f32 %v2344, %v2643
    %v2645 = vpop.f32.mrb[0].mxu0
    %v2646 = vadd.f32 %v2340, %v2645
    %v2647 = vpop.f32.mrb[0].mxu0
    %v2648 = vadd.f32 %v2344, %v2647
    %2649 = vmatprep.mubr.bf16.mxu0 %v2294
    %2650 = vmatmul.mubr.bf16.gmra.mrb[0].mxu0 %v2293
    %v2651 = vpop.f32.mrb[0].mxu0
    %v2652 = vadd.f32 %v2340, %v2651
    %v2653 = vpop.f32.mrb[0].mxu0
    %v2654 = vadd.f32 %v2344, %v2653
    %v2655 = vpop.f32.mrb[0].mxu0
    %v2656 = vadd.f32 %v2340, %v2655
    %v2657 = vpop.f32.mrb[0].mxu0
    %v2658 = vadd.f32 %v2344, %v2657
    %2659 = vmatprep.mubr.bf16.mxu0 %v2296
    %2660 = vmatmul.mubr.bf16.gmra.mrb[0].mxu0 %v2295
    %v2661 = vpop.f32.mrb[0].mxu0
    %v2662 = vadd.f32 %v2340, %v2661
    %v2663 = vpop.f32.mrb[0].mxu0
    %v2664 = vadd.f32 %v2344, %v2663
    %v2665 = vpop.f32.mrb[0].mxu0
    %v2666 = vadd.f32 %v2340, %v2665
    %v2667 = vpop.f32.mrb[0].mxu0
    %v2668 = vadd.f32 %v2344, %v2667
    %2669 = vmatprep.mubr.bf16.mxu0 %v2298
    %2670 = vmatmul.mubr.bf16.gmra.mrb[0].mxu0 %v2297
    %v2671 = vpop.f32.mrb[0].mxu0
    %v2672 = vadd.f32 %v2340, %v2671
    %v2673 = vpop.f32.mrb[0].mxu0
    %v2674 = vadd.f32 %v2344, %v2673
    %v2675 = vpop.f32.mrb[0].mxu0
    %v2676 = vadd.f32 %v2340, %v2675
    %v2677 = vpop.f32.mrb[0].mxu0
    %v2678 = vadd.f32 %v2344, %v2677
    %2679 = vmatprep.mubr.bf16.mxu0 %v2300
    %2680 = vmatmul.mubr.bf16.gmra.mrb[0].mxu0 %v2299
    %v2681 = vpop.f32.mrb[0].mxu0
    %v2682 = vadd.f32 %v2340, %v2681
    %v2683 = vpop.f32.mrb[0].mxu0
    %v2684 = vadd.f32 %v2344, %v2683
    %v2685 = vpop.f32.mrb[0].mxu0
    %v2686 = vadd.f32 %v2340, %v2685
    %v2687 = vpop.f32.mrb[0].mxu0
    %v2688 = vadd.f32 %v2344, %v2687
    %2689 = vmatprep.mubr.bf16.mxu0 %v2302
    %2690 = vmatmul.mubr.bf16.gmra.mrb[0].mxu0 %v2301
    %v2691 = vpop.f32.mrb[0].mxu0
    %v2692 = vadd.f32 %v2340, %v2691
    %v2693 = vpop.f32.mrb[0].mxu0
    %v2694 = vadd.f32 %v2344, %v2693
    %v2695 = vpop.f32.mrb[0].mxu0
    %v2696 = vadd.f32 %v2340, %v2695
    %v2697 = vpop.f32.mrb[0].mxu0
    %v2698 = vadd.f32 %v2344, %v2697
    %2699 = vdwg.mxu0
    %v2700 = vtanh.pop %v2542
    %v2701 = vtanh.pop %v2544
    %v2702 = vtanh.pop %v2546
    %v2703 = vtanh.pop %v2548
    %v2704 = vtanh.pop %v2552
    %v2705 = vtanh.pop %v2554
    %v2706 = vtanh.pop %v2556
    %v2707 = vtanh.pop %v2558
    %v2708 = vtanh.pop %v2562
    %v2709 = vtanh.pop %v2564
    %v2710 = vtanh.pop %v2566
    %v2711 = vtanh.pop %v2568
    %v2712 = vtanh.pop %v2572
    %v2713 = vtanh.pop %v2574
    %v2714 = vtanh.pop %v2576
    %v2715 = vtanh.pop %v2578
    %v2716 = vtanh.pop %v2582
    %v2717 = vtanh.pop %v2584
    %v2718 = vtanh.pop %v2586
    %v2719 = vtanh.pop %v2588
    %v2720 = vtanh.pop %v2592
    %v2721 = vtanh.pop %v2594
    %v2722 = vtanh.pop %v2596
    %v2723 = vtanh.pop %v2598
    %v2724 = vtanh.pop %v2602
    %v2725 = vtanh.pop %v2604
    %v2726 = vtanh.pop %v2606
    %v2727 = vtanh.pop %v2608
    %v2728 = vtanh.pop %v2612
    %v2729 = vtanh.pop %v2614
    %v2730 = vtanh.pop %v2616
    %v2731 = vtanh.pop %v2618
    %v2732 = vtanh.pop %v2622
    %v2733 = vtanh.pop %v2624
    %v2734 = vtanh.pop %v2626
    %v2735 = vtanh.pop %v2628
    %v2736 = vtanh.pop %v2632
    %v2737 = vtanh.pop %v2634
    %v2738 = vtanh.pop %v2636
    %v2739 = vtanh.pop %v2638
    %v2740 = vtanh.pop %v2642
    %v2741 = vtanh.pop %v2644
    %v2742 = vtanh.pop %v2646
    %v2743 = vtanh.pop %v2648
    %v2744 = vtanh.pop %v2652
    %v2745 = vtanh.pop %v2654
    %v2746 = vtanh.pop %v2656
    %v2747 = vtanh.pop %v2658
    %v2748 = vtanh.pop %v2662
    %v2749 = vtanh.pop %v2664
    %v2750 = vtanh.pop %v2666
    %v2751 = vtanh.pop %v2668
    %v2752 = vtanh.pop %v2672
    %v2753 = vtanh.pop %v2674
    %v2754 = vtanh.pop %v2676
    %v2755 = vtanh.pop %v2678
    %v2756 = vtanh.pop %v2682
    %v2757 = vtanh.pop %v2684
    %v2758 = vtanh.pop %v2686
    %v2759 = vtanh.pop %v2688
    %v2760 = vtanh.pop %v2692
    %v2761 = vtanh.pop %v2694
    %v2762 = vtanh.pop %v2696
    %v2763 = vtanh.pop %v2698
    %2764 = vst [vmem:[#allocation11] sm:$0xff] %v2700
    %2765 = vst [vmem:[#allocation11 + $0x8] sm:$0xff] %v2701
    %2766 = vst [vmem:[#allocation11 + $0x10] sm:$0xff] %v2702
    %2767 = vst [vmem:[#allocation11 + $0x18] sm:$0xff] %v2703
    %2768 = vst [vmem:[#allocation11 + $0x20] sm:$0xff] %v2704
    %2769 = vst [vmem:[#allocation11 + $0x28] sm:$0xff] %v2705
    %2770 = vst [vmem:[#allocation11 + $0x30] sm:$0xff] %v2706
    %2771 = vst [vmem:[#allocation11 + $0x38] sm:$0xff] %v2707
    %2772 = vst [vmem:[#allocation11 + $0x40] sm:$0xff] %v2708
    %2773 = vst [vmem:[#allocation11 + $0x48] sm:$0xff] %v2709
    %2774 = vst [vmem:[#allocation11 + $0x50] sm:$0xff] %v2710
    %2775 = vst [vmem:[#allocation11 + $0x58] sm:$0xff] %v2711
    %2776 = vst [vmem:[#allocation11 + $0x60] sm:$0xff] %v2712
    %2777 = vst [vmem:[#allocation11 + $0x68] sm:$0xff] %v2713
    %2778 = vst [vmem:[#allocation11 + $0x70] sm:$0xff] %v2714
    %2779 = vst [vmem:[#allocation11 + $0x78] sm:$0xff] %v2715
    %2780 = vst [vmem:[#allocation11 + $0x80] sm:$0xff] %v2716
    %2781 = vst [vmem:[#allocation11 + $0x88] sm:$0xff] %v2717
    %2782 = vst [vmem:[#allocation11 + $0x90] sm:$0xff] %v2718
    %2783 = vst [vmem:[#allocation11 + $0x98] sm:$0xff] %v2719
    %2784 = vst [vmem:[#allocation11 + $0xa0] sm:$0xff] %v2720
    %2785 = vst [vmem:[#allocation11 + $0xa8] sm:$0xff] %v2721
    %2786 = vst [vmem:[#allocation11 + $0xb0] sm:$0xff] %v2722
    %2787 = vst [vmem:[#allocation11 + $0xb8] sm:$0xff] %v2723
    %2788 = vst [vmem:[#allocation11 + $0xc0] sm:$0xff] %v2724
    %2789 = vst [vmem:[#allocation11 + $0xc8] sm:$0xff] %v2725
    %2790 = vst [vmem:[#allocation11 + $0xd0] sm:$0xff] %v2726
    %2791 = vst [vmem:[#allocation11 + $0xd8] sm:$0xff] %v2727
    %2792 = vst [vmem:[#allocation11 + $0xe0] sm:$0xff] %v2728
    %2793 = vst [vmem:[#allocation11 + $0xe8] sm:$0xff] %v2729
    %2794 = vst [vmem:[#allocation11 + $0xf0] sm:$0xff] %v2730
    %2795 = vst [vmem:[#allocation11 + $0xf8] sm:$0xff] %v2731
    %2796 = vst [vmem:[#allocation11 + $0x100] sm:$0xff] %v2732
    %2797 = vst [vmem:[#allocation11 + $0x108] sm:$0xff] %v2733
    %2798 = vst [vmem:[#allocation11 + $0x110] sm:$0xff] %v2734
    %2799 = vst [vmem:[#allocation11 + $0x118] sm:$0xff] %v2735
    %2800 = vst [vmem:[#allocation11 + $0x120] sm:$0xff] %v2736
    %2801 = vst [vmem:[#allocation11 + $0x128] sm:$0xff] %v2737
    %2802 = vst [vmem:[#allocation11 + $0x130] sm:$0xff] %v2738
    %2803 = vst [vmem:[#allocation11 + $0x138] sm:$0xff] %v2739
    %2804 = vst [vmem:[#allocation11 + $0x140] sm:$0xff] %v2740
    %2805 = vst [vmem:[#allocation11 + $0x148] sm:$0xff] %v2741
    %2806 = vst [vmem:[#allocation11 + $0x150] sm:$0xff] %v2742
    %2807 = vst [vmem:[#allocation11 + $0x158] sm:$0xff] %v2743
    %2808 = vst [vmem:[#allocation11 + $0x160] sm:$0xff] %v2744
    %2809 = vst [vmem:[#allocation11 + $0x168] sm:$0xff] %v2745
    %2810 = vst [vmem:[#allocation11 + $0x170] sm:$0xff] %v2746
    %2811 = vst [vmem:[#allocation11 + $0x178] sm:$0xff] %v2747
    %2812 = vst [vmem:[#allocation11 + $0x180] sm:$0xff] %v2748
    %2813 = vst [vmem:[#allocation11 + $0x188] sm:$0xff] %v2749
    %2814 = vst [vmem:[#allocation11 + $0x190] sm:$0xff] %v2750
    %2815 = vst [vmem:[#allocation11 + $0x198] sm:$0xff] %v2751
    %2816 = vst [vmem:[#allocation11 + $0x1a0] sm:$0xff] %v2752
    %2817 = vst [vmem:[#allocation11 + $0x1a8] sm:$0xff] %v2753
    %2818 = vst [vmem:[#allocation11 + $0x1b0] sm:$0xff] %v2754
    %2819 = vst [vmem:[#allocation11 + $0x1b8] sm:$0xff] %v2755
    %2820 = vst [vmem:[#allocation11 + $0x1c0] sm:$0xff] %v2756
    %2821 = vst [vmem:[#allocation11 + $0x1c8] sm:$0xff] %v2757
    %2822 = vst [vmem:[#allocation11 + $0x1d0] sm:$0xff] %v2758
    %2823 = vst [vmem:[#allocation11 + $0x1d8] sm:$0xff] %v2759
    %2824 = vst [vmem:[#allocation11 + $0x1e0] sm:$0xff] %v2760
    %2825 = vst [vmem:[#allocation11 + $0x1e8] sm:$0xff] %v2761
    %2826 = vst [vmem:[#allocation11 + $0x1f0] sm:$0xff] %v2762
    %2827 = vst [vmem:[#allocation11 + $0x1f8] sm:$0xff] %v2763
    // Predicated region
    $region70: #{tpu_custom_call.1} parent=1 // pred_check
      _
    $region71: #{tpu_custom_call.1} parent=1 // pred_check_branch
      %2829 = sbr.rel (0) target = $region73
    $region72: #{tpu_custom_call.1} parent=1 // pred_region
      %s2831 = ssub.s32 8192, 8192
      %2832 = vsyncadd [#allocation4], %s2831
      %s2833 = sshll.u32 [#allocation11], 4
      %s2834 = int_to_ptr.vmem [resolvable:$true] %s2833
      %2839 = dma.vmem_to_hbm [thread:$0]  %s2834, 8192, %s12, [#allocation4], 256, 256, 16
    $region73: #{tpu_custom_call.1} parent=1 // pred_fallthru
      _
    // Predicated region
    $region74: #{tpu_custom_call.1} parent=1 // pred_check
      _
    $region75: #{tpu_custom_call.1} parent=1 // pred_check_branch
      %2841 = sbr.rel (0) target = $region77
    $region76: #{tpu_custom_call.1} parent=1 // pred_region
      %2842 = dma.done [#allocation4], 8192
    $region77: #{tpu_custom_call.1} parent=1 // pred_fallthru
      _
    %2843 = vsyncpa [#allocation3], 1
    %2844 = vsyncpa [#allocation6], 1
    %2845 = vsyncpa [#allocation9], 1
    %2846 = vsyncpa [#allocation4], 1

</llo_original>
